<compile_context>
chip_gen: v7x
topology: tpu7x:2x2x1
jax: 0.10.0
libtpu: 0.0.40
codegen_flags: <defaults>
</compile_context>

<pallas_src>
import functools

import jax
import jax.numpy as jnp
from jax.experimental import pallas as pl
from jax.experimental.pallas import tpu as pltpu


# ------------------------------ fused kernel --------------------------------

def fused_cnn_kernel(x_ref, w1_ref, s1_ref, t1_ref,
                     w2b_ref, s2_ref, t2_ref,
                     w3_ref, s3_ref, t3_ref,
                     w4_ref, b4_ref, o_ref):
    """Whole EnhancedCNN forward for one batch row.

    x_ref  : (L2, 10) f32  row p holds x[4p-3 .. 4p+6] (zero padded).
    w1_ref : (3, 64)  f32  conv1 taps (k, cout).
    w2b_ref: (256,256) bf16 conv2 block weight; cols [:128] = conv at the even
             position of each pool window, cols [128:] = odd position.
    w3_ref : (L2*128, 512) bf16 Linear1 weight, rows permuted to the kernel's
             (position, channel) flatten order.
    w4_ref : (512, NCP) bf16 Linear2 weight, N padded to a multiple of 128.
    s*/t*  : folded BatchNorm scale / shift (conv/linear bias included), f32.
    o_ref  : (1, NCP) f32 logits (padded lanes carry the zero-padded bias).
    """
    f32 = jnp.float32
    bf16 = jnp.bfloat16
    l2 = x_ref.shape[0]
    c2o = w2b_ref.shape[1] // 2                 # 128 conv2 output channels

    x = x_ref[...]                              # (L2, 10)
    w1 = w1_ref[...]                            # (3, 64)
    s1 = s1_ref[...]                            # (1, 64)
    t1 = t1_ref[...]

    # ---- conv1 + BN + ReLU + MaxPool(2,2) -----------------------------------
    # Column j of x is sample x[4p - 3 + j]; conv1 centered at relative column
    # r uses columns r-1, r, r+1.  Each pooled value is the max of two adjacent
    # conv positions (BN before the max; ReLU after -- equivalent ordering).
    def conv1_at(r):
        return (x[:, r - 1:r] * w1[0:1, :]
                + x[:, r:r + 1] * w1[1:2, :]
                + x[:, r + 1:r + 2] * w1[2:3, :])            # (L2, 64)

    def pooled(r_even):
        a = conv1_at(r_even) * s1 + t1
        b = conv1_at(r_even + 1) * s1 + t1
        return jnp.maximum(jnp.maximum(a, b), 0.0)           # (L2, 64)

    a_m1 = pooled(1)        # conv1-pooled position 2p-1  (halo, recomputed)
    a_0 = pooled(3)         #                        2p
    a_1 = pooled(5)         #                        2p+1
    a_p2 = pooled(7)        #                        2p+2  (halo, recomputed)

    # conv2's zero padding: pooled positions -1 and L1 must read as zero.
    row = jax.lax.broadcasted_iota(jnp.int32, a_m1.shape, 0)
    a_m1 = jnp.where(row == 0, 0.0, a_m1)
    a_p2 = jnp.where(row == l2 - 1, 0.0, a_p2)

    # ---- conv2 + BN + ReLU + MaxPool(2,2) as one lane-dense block matmul ----
    p2 = jnp.concatenate([a_m1, a_0, a_1, a_p2], axis=-1)    # (L2, 256)
    c2 = jnp.dot(p2.astype(bf16), w2b_ref[...],
                 preferred_element_type=f32)                  # (L2, 256)
    c2 = c2 * s2_ref[...] + t2_ref[...]
    y2 = jnp.maximum(jnp.maximum(c2[:, :c2o], c2[:, c2o:]), 0.0)   # (L2, 128)

    # ---- Flatten (position-major; w3 rows were permuted once at init) ------
    flat = jnp.concatenate([y2[l:l + 1, :] for l in range(l2)], axis=-1)

    # ---- Linear1 + BN + ReLU -------------------------------------------------
    z3 = jnp.dot(flat.astype(bf16), w3_ref[...],
                 preferred_element_type=f32)                  # (1, 512)
    h = jnp.maximum(z3 * s3_ref[...] + t3_ref[...], 0.0)

    # ---- Linear2 (lane padded) ----------------------------------------------
    out = jnp.dot(h.astype(bf16), w4_ref[...],
                  preferred_element_type=f32) + b4_ref[...]   # (1, NCP)
    o_ref[...] = out


# ------------------------------ call wrapper ---------------------------------

def _run_fused(xpat, p):
    b, l2, win = xpat.shape
    ncp = p["w4m"].shape[1]
    hid = p["w3m"].shape[1]

    args = (xpat, p["w1k"], p["s1"], p["t1"], p["w2b"], p["s2d"], p["t2d"],
            p["w3m"], p["s3"], p["t3"], p["w4m"], p["b4"])

    def const_spec(a):
        return pl.BlockSpec(a.shape, lambda i: (0,) * a.ndim)

    in_specs = ([pl.BlockSpec((None, l2, win), lambda i: (i, 0, 0))]
                + [const_spec(a) for a in args[1:]])
    out_specs = pl.BlockSpec((None, 1, ncp), lambda i: (i, 0, 0))

    # Per-step operand footprint (weights + one input row + one output row).
    block_bytes = sum(int(a.size) * a.dtype.itemsize for a in args[1:])
    block_bytes += l2 * win * 4 + ncp * 4
    vmem_limit = int(min(48 << 20, 2 * block_bytes + (12 << 20)))

    flops = b * (2 * l2 * 8 * 64 * 3            # conv1 (incl. halo recompute)
                 + 2 * l2 * 256 * 256           # conv2 block matmul
                 + 2 * (l2 * 128) * hid         # Linear1
                 + 2 * hid * ncp)               # Linear2
    bytes_accessed = (sum(int(a.size) * a.dtype.itemsize for a in args[1:])
                      + int(xpat.size) * 4 + b * ncp * 4)

    return pl.pallas_call(
        fused_cnn_kernel,
        out_shape=jax.ShapeDtypeStruct((b, 1, ncp), jnp.float32),
        grid_spec=pltpu.PrefetchScalarGridSpec(
            num_scalar_prefetch=0,
            grid=(b,),
            in_specs=in_specs,
            out_specs=out_specs,
        ),
        compiler_params=pltpu.CompilerParams(
            dimension_semantics=("parallel",),
            vmem_limit_bytes=vmem_limit,
        ),
        cost_estimate=pl.CostEstimate(flops=int(flops), transcendentals=0,
                                      bytes_accessed=int(bytes_accessed)),
    )(*args)


def enhanced_cnn_forward(x, params, *, num_classes):
    """x: (B, input_size) float32 -> logits (B, num_classes)."""
    b, l = x.shape
    assert l % 4 == 0, "Pallas port assumes input_size % 4 == 0"
    l2 = l // 4
    # Host-side prep (the only host ops besides the final slice): lane-pack the
    # 10 input samples that feed each output row of the fused kernel.
    xp = jnp.pad(x, ((0, 0), (3, 3)))
    idx = 4 * jnp.arange(l2)[:, None] + jnp.arange(10)[None, :]
    xpat = xp[:, idx]                                         # (B, L2, 10)
    out = _run_fused(xpat, params)                            # (B, 1, NCP)
    return out[:, 0, :num_classes]


# ------------------------------ parameter prep -------------------------------

def _fused_conv_pool_weight(w):
    """w (Cout, Cin, 3) -> (4*Cin, 2*Cout) block weight for conv+pool matmul."""
    cout, cin, k = w.shape
    assert k == 3
    wr = jnp.transpose(w, (2, 1, 0)).reshape(3 * cin, cout)   # row = k*Cin+ci
    wb = jnp.zeros((4 * cin, 2 * cout), jnp.float32)
    wb = wb.at[:3 * cin, :cout].set(wr)          # conv at even pool position
    wb = wb.at[cin:, cout:].set(wr)              # conv at odd pool position
    return wb


def fold_bn(gamma, beta, mean, var, conv_bias, eps=1e-5):
    scale = gamma / jnp.sqrt(var + eps)
    shift = beta + (conv_bias - mean) * scale
    return scale[None, :], shift[None, :]


def init_params(key, input_size, num_classes):
    assert input_size % 4 == 0, "Pallas port assumes input_size % 4 == 0"
    l1 = input_size // 2
    l2 = l1 // 2
    flattened = 128 * l2
    ks = jax.random.split(key, 12)

    def u(k, shape, fan_in):
        bound = 1.0 / jnp.sqrt(fan_in)
        return jax.random.uniform(k, shape, jnp.float32, -bound, bound)

    raw = {
        "w1": u(ks[0], (64, 1, 3), 3.0),      "b1": u(ks[1], (64,), 3.0),
        "w2": u(ks[2], (128, 64, 3), 192.0),  "b2": u(ks[3], (128,), 192.0),
        "w3": u(ks[4], (512, flattened), float(flattened)),
        "b3": u(ks[5], (512,), float(flattened)),
        "w4": u(ks[6], (num_classes, 512), 512.0),
        "b4": u(ks[7], (num_classes,), 512.0),
    }
    # Randomized BatchNorm (eval / running-stats) params so the folding path is
    # actually exercised against the reference.
    for i, (name, c) in enumerate((("bn1", 64), ("bn2", 128), ("bn3", 512))):
        kk = jax.random.split(ks[8 + i], 4)
        raw[name] = dict(
            gamma=jax.random.uniform(kk[0], (c,), jnp.float32, 0.5, 1.5),
            beta=0.1 * jax.random.normal(kk[1], (c,), jnp.float32),
            mean=0.1 * jax.random.normal(kk[2], (c,), jnp.float32),
            var=jax.random.uniform(kk[3], (c,), jnp.float32, 0.5, 1.5),
        )

    s1, t1 = fold_bn(**raw["bn1"], conv_bias=raw["b1"])
    s2, t2 = fold_bn(**raw["bn2"], conv_bias=raw["b2"])
    s3, t3 = fold_bn(**raw["bn3"], conv_bias=raw["b3"])

    # conv1 taps as (k, cout).
    w1k = jnp.transpose(raw["w1"][:, 0, :], (1, 0))            # (3, 64)
    # conv2 fused conv+pool block weight, bf16 for weight streaming.
    w2b = _fused_conv_pool_weight(raw["w2"]).astype(jnp.bfloat16)   # (256, 256)
    # Linear1 rows permuted: kernel flattens (position, channel) while PyTorch
    # flattens (channel, position).
    w3m = (raw["w3"].reshape(512, 128, l2).transpose(2, 1, 0)
           .reshape(l2 * 128, 512).astype(jnp.bfloat16))
    # Final Linear: pad N (num_classes) to a lane-dense 128 multiple.
    ncp = ((num_classes + 127) // 128) * 128
    w4m = (jnp.zeros((512, ncp), jnp.float32)
           .at[:, :num_classes].set(raw["w4"].T).astype(jnp.bfloat16))
    b4 = jnp.zeros((1, ncp), jnp.float32).at[0, :num_classes].set(raw["b4"])

    folded = {
        "w1k": w1k, "s1": s1, "t1": t1,
        "w2b": w2b,
        "s2d": jnp.concatenate([s2, s2], -1), "t2d": jnp.concatenate([t2, t2], -1),
        "w3m": w3m, "s3": s3, "t3": t3,
        "w4m": w4m, "b4": b4,
    }
    return raw, folded


# ------------------------- pure-JAX reference model --------------------------

def ref_forward(x, raw, eps=1e-5):
    def conv1d(x, w, bias):                      # x (B,Cin,L), w (Cout,Cin,3)
        b, cin, l = x.shape
        xp = jnp.pad(x, ((0, 0), (0, 0), (1, 1)))
        cols = jnp.stack([xp[:, :, k:k + l] for k in range(3)], axis=-1)
        return jnp.einsum("bclk,ock->bol", cols, w) + bias[None, :, None]

    def bn(x, prm, ax):
        shp = [1] * x.ndim
        shp[ax] = -1
        return (x - prm["mean"].reshape(shp)) / jnp.sqrt(prm["var"].reshape(shp) + eps) \
            * prm["gamma"].reshape(shp) + prm["beta"].reshape(shp)

    def maxpool(x):                              # (B,C,L) -> (B,C,L//2)
        b, c, l = x.shape
        return x.reshape(b, c, l // 2, 2).max(-1)

    b, l = x.shape
    h = x.reshape(b, 1, l)
    h = maxpool(jax.nn.relu(bn(conv1d(h, raw["w1"], raw["b1"]), raw["bn1"], 1)))
    h = maxpool(jax.nn.relu(bn(conv1d(h, raw["w2"], raw["b2"]), raw["bn2"], 1)))
    h = h.reshape(b, -1)                         # (B, C*L) channel-major
    h = jax.nn.relu(bn(h @ raw["w3"].T + raw["b3"], raw["bn3"], 1))
    return h @ raw["w4"].T + raw["b4"]


# ----------------------------------- main ------------------------------------

if __name__ == "__main__":
    INPUT_SIZE = 16
    NUM_CLASSES = 8
    BATCH = 2

    key = jax.random.PRNGKey(0)
    kx, kp = jax.random.split(key)
    x = jax.random.normal(kx, (BATCH, INPUT_SIZE), jnp.float32)

    raw, folded = init_params(kp, INPUT_SIZE, NUM_CLASSES)

    fwd = jax.jit(functools.partial(enhanced_cnn_forward, num_classes=NUM_CLASSES))
    out = jax.block_until_ready(fwd(x, folded))

    ref = ref_forward(x, raw)
    assert out.shape == (BATCH, NUM_CLASSES), out.shape
    err = float(jnp.max(jnp.abs(out - ref)))
    # bf16 weights/activations with f32 accumulation -> a few e-3 end-to-end.
    assert jnp.allclose(out, ref, atol=3e-2, rtol=3e-2), f"max abs err {err}"

    print("KERNEL_OK")
</pallas_src>

<mosaic_0001>
module attributes {stable_mosaic.version = 11 : i64} {
  func.func @fused_cnn_kernel(%arg0: i32, %arg1: memref<1x4x10xf32, #tpu.memory_space<vmem>>, %arg2: memref<3x64xf32, #tpu.memory_space<vmem>>, %arg3: memref<1x64xf32, #tpu.memory_space<vmem>>, %arg4: memref<1x64xf32, #tpu.memory_space<vmem>>, %arg5: memref<256x256xbf16, #tpu.memory_space<vmem>>, %arg6: memref<1x256xf32, #tpu.memory_space<vmem>>, %arg7: memref<1x256xf32, #tpu.memory_space<vmem>>, %arg8: memref<512x512xbf16, #tpu.memory_space<vmem>>, %arg9: memref<1x512xf32, #tpu.memory_space<vmem>>, %arg10: memref<1x512xf32, #tpu.memory_space<vmem>>, %arg11: memref<512x128xbf16, #tpu.memory_space<vmem>>, %arg12: memref<1x128xf32, #tpu.memory_space<vmem>>, %arg13: memref<1x1x128xf32, #tpu.memory_space<vmem>>) attributes {dimension_semantics = [#tpu.dimension_semantics<parallel>], iteration_bounds = array<i64: 2>, scalar_prefetch = 0 : i64, scratch_operands = 0 : i64, tpu.core_type = #tpu.core_type<tc>, window_params = [{transform_indices = @transform_0, window_bounds = array<i64: 1, 4, 10>}, {pipeline_mode = #tpu.pipeline_mode<synchronous>, transform_indices = @transform_1, window_bounds = array<i64: 3, 64>}, {pipeline_mode = #tpu.pipeline_mode<synchronous>, transform_indices = @transform_2, window_bounds = array<i64: 1, 64>}, {pipeline_mode = #tpu.pipeline_mode<synchronous>, transform_indices = @transform_3, window_bounds = array<i64: 1, 64>}, {pipeline_mode = #tpu.pipeline_mode<synchronous>, transform_indices = @transform_4, window_bounds = array<i64: 256, 256>}, {pipeline_mode = #tpu.pipeline_mode<synchronous>, transform_indices = @transform_5, window_bounds = array<i64: 1, 256>}, {pipeline_mode = #tpu.pipeline_mode<synchronous>, transform_indices = @transform_6, window_bounds = array<i64: 1, 256>}, {pipeline_mode = #tpu.pipeline_mode<synchronous>, transform_indices = @transform_7, window_bounds = array<i64: 512, 512>}, {pipeline_mode = #tpu.pipeline_mode<synchronous>, transform_indices = @transform_8, window_bounds = array<i64: 1, 512>}, {pipeline_mode = #tpu.pipeline_mode<synchronous>, transform_indices = @transform_9, window_bounds = array<i64: 1, 512>}, {pipeline_mode = #tpu.pipeline_mode<synchronous>, transform_indices = @transform_10, window_bounds = array<i64: 512, 128>}, {pipeline_mode = #tpu.pipeline_mode<synchronous>, transform_indices = @transform_11, window_bounds = array<i64: 1, 128>}, {transform_indices = @transform_12, window_bounds = array<i64: 1, 1, 128>}]} {
    %c0 = arith.constant 0 : index
    %c0_0 = arith.constant 0 : index
    %c0_1 = arith.constant 0 : index
    %0 = vector.load %arg1[%c0, %c0_0, %c0_1] : memref<1x4x10xf32, #tpu.memory_space<vmem>>, vector<1x4x10xf32>
    %1 = vector.shape_cast %0 : vector<1x4x10xf32> to vector<4x10xf32>
    %c0_2 = arith.constant 0 : index
    %c0_3 = arith.constant 0 : index
    %2 = vector.load %arg2[%c0_2, %c0_3] : memref<3x64xf32, #tpu.memory_space<vmem>>, vector<3x64xf32>
    %c0_4 = arith.constant 0 : index
    %c0_5 = arith.constant 0 : index
    %3 = vector.load %arg3[%c0_4, %c0_5] : memref<1x64xf32, #tpu.memory_space<vmem>>, vector<1x64xf32>
    %c0_6 = arith.constant 0 : index
    %c0_7 = arith.constant 0 : index
    %4 = vector.load %arg4[%c0_6, %c0_7] : memref<1x64xf32, #tpu.memory_space<vmem>>, vector<1x64xf32>
    %5 = vector.extract_strided_slice %1 {offsets = [0, 0], sizes = [4, 1], strides = [1, 1]} : vector<4x10xf32> to vector<4x1xf32>
    %6 = vector.extract_strided_slice %2 {offsets = [0, 0], sizes = [1, 64], strides = [1, 1]} : vector<3x64xf32> to vector<1x64xf32>
    %7 = vector.broadcast %5 : vector<4x1xf32> to vector<4x64xf32>
    %8 = vector.broadcast %6 : vector<1x64xf32> to vector<4x64xf32>
    %9 = arith.mulf %7, %8 : vector<4x64xf32>
    %10 = vector.extract_strided_slice %1 {offsets = [0, 1], sizes = [4, 1], strides = [1, 1]} : vector<4x10xf32> to vector<4x1xf32>
    %11 = vector.extract_strided_slice %2 {offsets = [1, 0], sizes = [1, 64], strides = [1, 1]} : vector<3x64xf32> to vector<1x64xf32>
    %12 = vector.broadcast %10 : vector<4x1xf32> to vector<4x64xf32>
    %13 = vector.broadcast %11 : vector<1x64xf32> to vector<4x64xf32>
    %14 = arith.mulf %12, %13 : vector<4x64xf32>
    %15 = arith.addf %9, %14 : vector<4x64xf32>
    %16 = vector.extract_strided_slice %1 {offsets = [0, 2], sizes = [4, 1], strides = [1, 1]} : vector<4x10xf32> to vector<4x1xf32>
    %17 = vector.extract_strided_slice %2 {offsets = [2, 0], sizes = [1, 64], strides = [1, 1]} : vector<3x64xf32> to vector<1x64xf32>
    %18 = vector.broadcast %16 : vector<4x1xf32> to vector<4x64xf32>
    %19 = vector.broadcast %17 : vector<1x64xf32> to vector<4x64xf32>
    %20 = arith.mulf %18, %19 : vector<4x64xf32>
    %21 = arith.addf %15, %20 : vector<4x64xf32>
    %22 = vector.broadcast %3 : vector<1x64xf32> to vector<4x64xf32>
    %23 = arith.mulf %21, %22 : vector<4x64xf32>
    %24 = vector.broadcast %4 : vector<1x64xf32> to vector<4x64xf32>
    %25 = arith.addf %23, %24 : vector<4x64xf32>
    %26 = vector.extract_strided_slice %1 {offsets = [0, 1], sizes = [4, 1], strides = [1, 1]} : vector<4x10xf32> to vector<4x1xf32>
    %27 = vector.extract_strided_slice %2 {offsets = [0, 0], sizes = [1, 64], strides = [1, 1]} : vector<3x64xf32> to vector<1x64xf32>
    %28 = vector.broadcast %26 : vector<4x1xf32> to vector<4x64xf32>
    %29 = vector.broadcast %27 : vector<1x64xf32> to vector<4x64xf32>
    %30 = arith.mulf %28, %29 : vector<4x64xf32>
    %31 = vector.extract_strided_slice %1 {offsets = [0, 2], sizes = [4, 1], strides = [1, 1]} : vector<4x10xf32> to vector<4x1xf32>
    %32 = vector.extract_strided_slice %2 {offsets = [1, 0], sizes = [1, 64], strides = [1, 1]} : vector<3x64xf32> to vector<1x64xf32>
    %33 = vector.broadcast %31 : vector<4x1xf32> to vector<4x64xf32>
    %34 = vector.broadcast %32 : vector<1x64xf32> to vector<4x64xf32>
    %35 = arith.mulf %33, %34 : vector<4x64xf32>
    %36 = arith.addf %30, %35 : vector<4x64xf32>
    %37 = vector.extract_strided_slice %1 {offsets = [0, 3], sizes = [4, 1], strides = [1, 1]} : vector<4x10xf32> to vector<4x1xf32>
    %38 = vector.extract_strided_slice %2 {offsets = [2, 0], sizes = [1, 64], strides = [1, 1]} : vector<3x64xf32> to vector<1x64xf32>
    %39 = vector.broadcast %37 : vector<4x1xf32> to vector<4x64xf32>
    %40 = vector.broadcast %38 : vector<1x64xf32> to vector<4x64xf32>
    %41 = arith.mulf %39, %40 : vector<4x64xf32>
    %42 = arith.addf %36, %41 : vector<4x64xf32>
    %43 = vector.broadcast %3 : vector<1x64xf32> to vector<4x64xf32>
    %44 = arith.mulf %42, %43 : vector<4x64xf32>
    %45 = vector.broadcast %4 : vector<1x64xf32> to vector<4x64xf32>
    %46 = arith.addf %44, %45 : vector<4x64xf32>
    %47 = arith.maximumf %25, %46 : vector<4x64xf32>
    %cst = arith.constant 0.000000e+00 : f32
    %48 = vector.broadcast %cst : f32 to vector<4x64xf32>
    %49 = arith.maximumf %47, %48 : vector<4x64xf32>
    %50 = vector.extract_strided_slice %1 {offsets = [0, 2], sizes = [4, 1], strides = [1, 1]} : vector<4x10xf32> to vector<4x1xf32>
    %51 = vector.extract_strided_slice %2 {offsets = [0, 0], sizes = [1, 64], strides = [1, 1]} : vector<3x64xf32> to vector<1x64xf32>
    %52 = vector.broadcast %50 : vector<4x1xf32> to vector<4x64xf32>
    %53 = vector.broadcast %51 : vector<1x64xf32> to vector<4x64xf32>
    %54 = arith.mulf %52, %53 : vector<4x64xf32>
    %55 = vector.extract_strided_slice %1 {offsets = [0, 3], sizes = [4, 1], strides = [1, 1]} : vector<4x10xf32> to vector<4x1xf32>
    %56 = vector.extract_strided_slice %2 {offsets = [1, 0], sizes = [1, 64], strides = [1, 1]} : vector<3x64xf32> to vector<1x64xf32>
    %57 = vector.broadcast %55 : vector<4x1xf32> to vector<4x64xf32>
    %58 = vector.broadcast %56 : vector<1x64xf32> to vector<4x64xf32>
    %59 = arith.mulf %57, %58 : vector<4x64xf32>
    %60 = arith.addf %54, %59 : vector<4x64xf32>
    %61 = vector.extract_strided_slice %1 {offsets = [0, 4], sizes = [4, 1], strides = [1, 1]} : vector<4x10xf32> to vector<4x1xf32>
    %62 = vector.extract_strided_slice %2 {offsets = [2, 0], sizes = [1, 64], strides = [1, 1]} : vector<3x64xf32> to vector<1x64xf32>
    %63 = vector.broadcast %61 : vector<4x1xf32> to vector<4x64xf32>
    %64 = vector.broadcast %62 : vector<1x64xf32> to vector<4x64xf32>
    %65 = arith.mulf %63, %64 : vector<4x64xf32>
    %66 = arith.addf %60, %65 : vector<4x64xf32>
    %67 = vector.broadcast %3 : vector<1x64xf32> to vector<4x64xf32>
    %68 = arith.mulf %66, %67 : vector<4x64xf32>
    %69 = vector.broadcast %4 : vector<1x64xf32> to vector<4x64xf32>
    %70 = arith.addf %68, %69 : vector<4x64xf32>
    %71 = vector.extract_strided_slice %1 {offsets = [0, 3], sizes = [4, 1], strides = [1, 1]} : vector<4x10xf32> to vector<4x1xf32>
    %72 = vector.extract_strided_slice %2 {offsets = [0, 0], sizes = [1, 64], strides = [1, 1]} : vector<3x64xf32> to vector<1x64xf32>
    %73 = vector.broadcast %71 : vector<4x1xf32> to vector<4x64xf32>
    %74 = vector.broadcast %72 : vector<1x64xf32> to vector<4x64xf32>
    %75 = arith.mulf %73, %74 : vector<4x64xf32>
    %76 = vector.extract_strided_slice %1 {offsets = [0, 4], sizes = [4, 1], strides = [1, 1]} : vector<4x10xf32> to vector<4x1xf32>
    %77 = vector.extract_strided_slice %2 {offsets = [1, 0], sizes = [1, 64], strides = [1, 1]} : vector<3x64xf32> to vector<1x64xf32>
    %78 = vector.broadcast %76 : vector<4x1xf32> to vector<4x64xf32>
    %79 = vector.broadcast %77 : vector<1x64xf32> to vector<4x64xf32>
    %80 = arith.mulf %78, %79 : vector<4x64xf32>
    %81 = arith.addf %75, %80 : vector<4x64xf32>
    %82 = vector.extract_strided_slice %1 {offsets = [0, 5], sizes = [4, 1], strides = [1, 1]} : vector<4x10xf32> to vector<4x1xf32>
    %83 = vector.extract_strided_slice %2 {offsets = [2, 0], sizes = [1, 64], strides = [1, 1]} : vector<3x64xf32> to vector<1x64xf32>
    %84 = vector.broadcast %82 : vector<4x1xf32> to vector<4x64xf32>
    %85 = vector.broadcast %83 : vector<1x64xf32> to vector<4x64xf32>
    %86 = arith.mulf %84, %85 : vector<4x64xf32>
    %87 = arith.addf %81, %86 : vector<4x64xf32>
    %88 = vector.broadcast %3 : vector<1x64xf32> to vector<4x64xf32>
    %89 = arith.mulf %87, %88 : vector<4x64xf32>
    %90 = vector.broadcast %4 : vector<1x64xf32> to vector<4x64xf32>
    %91 = arith.addf %89, %90 : vector<4x64xf32>
    %92 = arith.maximumf %70, %91 : vector<4x64xf32>
    %cst_8 = arith.constant 0.000000e+00 : f32
    %93 = vector.broadcast %cst_8 : f32 to vector<4x64xf32>
    %94 = arith.maximumf %92, %93 : vector<4x64xf32>
    %95 = vector.extract_strided_slice %1 {offsets = [0, 4], sizes = [4, 1], strides = [1, 1]} : vector<4x10xf32> to vector<4x1xf32>
    %96 = vector.extract_strided_slice %2 {offsets = [0, 0], sizes = [1, 64], strides = [1, 1]} : vector<3x64xf32> to vector<1x64xf32>
    %97 = vector.broadcast %95 : vector<4x1xf32> to vector<4x64xf32>
    %98 = vector.broadcast %96 : vector<1x64xf32> to vector<4x64xf32>
    %99 = arith.mulf %97, %98 : vector<4x64xf32>
    %100 = vector.extract_strided_slice %1 {offsets = [0, 5], sizes = [4, 1], strides = [1, 1]} : vector<4x10xf32> to vector<4x1xf32>
    %101 = vector.extract_strided_slice %2 {offsets = [1, 0], sizes = [1, 64], strides = [1, 1]} : vector<3x64xf32> to vector<1x64xf32>
    %102 = vector.broadcast %100 : vector<4x1xf32> to vector<4x64xf32>
    %103 = vector.broadcast %101 : vector<1x64xf32> to vector<4x64xf32>
    %104 = arith.mulf %102, %103 : vector<4x64xf32>
    %105 = arith.addf %99, %104 : vector<4x64xf32>
    %106 = vector.extract_strided_slice %1 {offsets = [0, 6], sizes = [4, 1], strides = [1, 1]} : vector<4x10xf32> to vector<4x1xf32>
    %107 = vector.extract_strided_slice %2 {offsets = [2, 0], sizes = [1, 64], strides = [1, 1]} : vector<3x64xf32> to vector<1x64xf32>
    %108 = vector.broadcast %106 : vector<4x1xf32> to vector<4x64xf32>
    %109 = vector.broadcast %107 : vector<1x64xf32> to vector<4x64xf32>
    %110 = arith.mulf %108, %109 : vector<4x64xf32>
    %111 = arith.addf %105, %110 : vector<4x64xf32>
    %112 = vector.broadcast %3 : vector<1x64xf32> to vector<4x64xf32>
    %113 = arith.mulf %111, %112 : vector<4x64xf32>
    %114 = vector.broadcast %4 : vector<1x64xf32> to vector<4x64xf32>
    %115 = arith.addf %113, %114 : vector<4x64xf32>
    %116 = vector.extract_strided_slice %1 {offsets = [0, 5], sizes = [4, 1], strides = [1, 1]} : vector<4x10xf32> to vector<4x1xf32>
    %117 = vector.extract_strided_slice %2 {offsets = [0, 0], sizes = [1, 64], strides = [1, 1]} : vector<3x64xf32> to vector<1x64xf32>
    %118 = vector.broadcast %116 : vector<4x1xf32> to vector<4x64xf32>
    %119 = vector.broadcast %117 : vector<1x64xf32> to vector<4x64xf32>
    %120 = arith.mulf %118, %119 : vector<4x64xf32>
    %121 = vector.extract_strided_slice %1 {offsets = [0, 6], sizes = [4, 1], strides = [1, 1]} : vector<4x10xf32> to vector<4x1xf32>
    %122 = vector.extract_strided_slice %2 {offsets = [1, 0], sizes = [1, 64], strides = [1, 1]} : vector<3x64xf32> to vector<1x64xf32>
    %123 = vector.broadcast %121 : vector<4x1xf32> to vector<4x64xf32>
    %124 = vector.broadcast %122 : vector<1x64xf32> to vector<4x64xf32>
    %125 = arith.mulf %123, %124 : vector<4x64xf32>
    %126 = arith.addf %120, %125 : vector<4x64xf32>
    %127 = vector.extract_strided_slice %1 {offsets = [0, 7], sizes = [4, 1], strides = [1, 1]} : vector<4x10xf32> to vector<4x1xf32>
    %128 = vector.extract_strided_slice %2 {offsets = [2, 0], sizes = [1, 64], strides = [1, 1]} : vector<3x64xf32> to vector<1x64xf32>
    %129 = vector.broadcast %127 : vector<4x1xf32> to vector<4x64xf32>
    %130 = vector.broadcast %128 : vector<1x64xf32> to vector<4x64xf32>
    %131 = arith.mulf %129, %130 : vector<4x64xf32>
    %132 = arith.addf %126, %131 : vector<4x64xf32>
    %133 = vector.broadcast %3 : vector<1x64xf32> to vector<4x64xf32>
    %134 = arith.mulf %132, %133 : vector<4x64xf32>
    %135 = vector.broadcast %4 : vector<1x64xf32> to vector<4x64xf32>
    %136 = arith.addf %134, %135 : vector<4x64xf32>
    %137 = arith.maximumf %115, %136 : vector<4x64xf32>
    %cst_9 = arith.constant 0.000000e+00 : f32
    %138 = vector.broadcast %cst_9 : f32 to vector<4x64xf32>
    %139 = arith.maximumf %137, %138 : vector<4x64xf32>
    %140 = vector.extract_strided_slice %1 {offsets = [0, 6], sizes = [4, 1], strides = [1, 1]} : vector<4x10xf32> to vector<4x1xf32>
    %141 = vector.extract_strided_slice %2 {offsets = [0, 0], sizes = [1, 64], strides = [1, 1]} : vector<3x64xf32> to vector<1x64xf32>
    %142 = vector.broadcast %140 : vector<4x1xf32> to vector<4x64xf32>
    %143 = vector.broadcast %141 : vector<1x64xf32> to vector<4x64xf32>
    %144 = arith.mulf %142, %143 : vector<4x64xf32>
    %145 = vector.extract_strided_slice %1 {offsets = [0, 7], sizes = [4, 1], strides = [1, 1]} : vector<4x10xf32> to vector<4x1xf32>
    %146 = vector.extract_strided_slice %2 {offsets = [1, 0], sizes = [1, 64], strides = [1, 1]} : vector<3x64xf32> to vector<1x64xf32>
    %147 = vector.broadcast %145 : vector<4x1xf32> to vector<4x64xf32>
    %148 = vector.broadcast %146 : vector<1x64xf32> to vector<4x64xf32>
    %149 = arith.mulf %147, %148 : vector<4x64xf32>
    %150 = arith.addf %144, %149 : vector<4x64xf32>
    %151 = vector.extract_strided_slice %1 {offsets = [0, 8], sizes = [4, 1], strides = [1, 1]} : vector<4x10xf32> to vector<4x1xf32>
    %152 = vector.extract_strided_slice %2 {offsets = [2, 0], sizes = [1, 64], strides = [1, 1]} : vector<3x64xf32> to vector<1x64xf32>
    %153 = vector.broadcast %151 : vector<4x1xf32> to vector<4x64xf32>
    %154 = vector.broadcast %152 : vector<1x64xf32> to vector<4x64xf32>
    %155 = arith.mulf %153, %154 : vector<4x64xf32>
    %156 = arith.addf %150, %155 : vector<4x64xf32>
    %157 = vector.broadcast %3 : vector<1x64xf32> to vector<4x64xf32>
    %158 = arith.mulf %156, %157 : vector<4x64xf32>
    %159 = vector.broadcast %4 : vector<1x64xf32> to vector<4x64xf32>
    %160 = arith.addf %158, %159 : vector<4x64xf32>
    %161 = vector.extract_strided_slice %1 {offsets = [0, 7], sizes = [4, 1], strides = [1, 1]} : vector<4x10xf32> to vector<4x1xf32>
    %162 = vector.extract_strided_slice %2 {offsets = [0, 0], sizes = [1, 64], strides = [1, 1]} : vector<3x64xf32> to vector<1x64xf32>
    %163 = vector.broadcast %161 : vector<4x1xf32> to vector<4x64xf32>
    %164 = vector.broadcast %162 : vector<1x64xf32> to vector<4x64xf32>
    %165 = arith.mulf %163, %164 : vector<4x64xf32>
    %166 = vector.extract_strided_slice %1 {offsets = [0, 8], sizes = [4, 1], strides = [1, 1]} : vector<4x10xf32> to vector<4x1xf32>
    %167 = vector.extract_strided_slice %2 {offsets = [1, 0], sizes = [1, 64], strides = [1, 1]} : vector<3x64xf32> to vector<1x64xf32>
    %168 = vector.broadcast %166 : vector<4x1xf32> to vector<4x64xf32>
    %169 = vector.broadcast %167 : vector<1x64xf32> to vector<4x64xf32>
    %170 = arith.mulf %168, %169 : vector<4x64xf32>
    %171 = arith.addf %165, %170 : vector<4x64xf32>
    %172 = vector.extract_strided_slice %1 {offsets = [0, 9], sizes = [4, 1], strides = [1, 1]} : vector<4x10xf32> to vector<4x1xf32>
    %173 = vector.extract_strided_slice %2 {offsets = [2, 0], sizes = [1, 64], strides = [1, 1]} : vector<3x64xf32> to vector<1x64xf32>
    %174 = vector.broadcast %172 : vector<4x1xf32> to vector<4x64xf32>
    %175 = vector.broadcast %173 : vector<1x64xf32> to vector<4x64xf32>
    %176 = arith.mulf %174, %175 : vector<4x64xf32>
    %177 = arith.addf %171, %176 : vector<4x64xf32>
    %178 = vector.broadcast %3 : vector<1x64xf32> to vector<4x64xf32>
    %179 = arith.mulf %177, %178 : vector<4x64xf32>
    %180 = vector.broadcast %4 : vector<1x64xf32> to vector<4x64xf32>
    %181 = arith.addf %179, %180 : vector<4x64xf32>
    %182 = arith.maximumf %160, %181 : vector<4x64xf32>
    %cst_10 = arith.constant 0.000000e+00 : f32
    %183 = vector.broadcast %cst_10 : f32 to vector<4x64xf32>
    %184 = arith.maximumf %182, %183 : vector<4x64xf32>
    %185 = tpu.iota {dimensions = array<i32: 0>} : vector<4x64xi32>
    %c0_i32 = arith.constant 0 : i32
    %186 = vector.broadcast %c0_i32 : i32 to vector<4x64xi32>
    %187 = arith.cmpi eq, %185, %186 : vector<4x64xi32>
    %cst_11 = arith.constant 0.000000e+00 : f32
    %188 = vector.broadcast %cst_11 : f32 to vector<4x64xf32>
    %189 = arith.select %187, %188, %49 : vector<4x64xi1>, vector<4x64xf32>
    %c3_i32 = arith.constant 3 : i32
    %190 = vector.broadcast %c3_i32 : i32 to vector<4x64xi32>
    %191 = arith.cmpi eq, %185, %190 : vector<4x64xi32>
    %cst_12 = arith.constant 0.000000e+00 : f32
    %192 = vector.broadcast %cst_12 : f32 to vector<4x64xf32>
    %193 = arith.select %191, %192, %184 : vector<4x64xi1>, vector<4x64xf32>
    %194 = tpu.concatenate %189, %94, %139, %193 in 1 : vector<4x64xf32>, vector<4x64xf32>, vector<4x64xf32>, vector<4x64xf32> -> vector<4x256xf32>
    %195 = arith.truncf %194 : vector<4x256xf32> to vector<4x256xbf16>
    %c0_13 = arith.constant 0 : index
    %c0_14 = arith.constant 0 : index
    %196 = vector.load %arg5[%c0_13, %c0_14] : memref<256x256xbf16, #tpu.memory_space<vmem>>, vector<256x256xbf16>
    %cst_15 = arith.constant dense<0.000000e+00> : vector<4x256xf32>
    %197 = tpu.matmul %195, %196, %cst_15 {dimension_numbers = #tpu.dot_dimension_numbers<[1], [0], [0], [1], [0, 0, 1, 1], [], []>} : vector<4x256xbf16>, vector<256x256xbf16>, vector<4x256xf32> -> vector<4x256xf32>
    %c0_16 = arith.constant 0 : index
    %c0_17 = arith.constant 0 : index
    %198 = vector.load %arg6[%c0_16, %c0_17] : memref<1x256xf32, #tpu.memory_space<vmem>>, vector<1x256xf32>
    %199 = vector.broadcast %198 : vector<1x256xf32> to vector<4x256xf32>
    %200 = arith.mulf %197, %199 : vector<4x256xf32>
    %c0_18 = arith.constant 0 : index
    %c0_19 = arith.constant 0 : index
    %201 = vector.load %arg7[%c0_18, %c0_19] : memref<1x256xf32, #tpu.memory_space<vmem>>, vector<1x256xf32>
    %202 = vector.broadcast %201 : vector<1x256xf32> to vector<4x256xf32>
    %203 = arith.addf %200, %202 : vector<4x256xf32>
    %204 = vector.extract_strided_slice %203 {offsets = [0, 0], sizes = [4, 128], strides = [1, 1]} : vector<4x256xf32> to vector<4x128xf32>
    %205 = vector.extract_strided_slice %203 {offsets = [0, 128], sizes = [4, 128], strides = [1, 1]} : vector<4x256xf32> to vector<4x128xf32>
    %206 = arith.maximumf %204, %205 : vector<4x128xf32>
    %cst_20 = arith.constant 0.000000e+00 : f32
    %207 = vector.broadcast %cst_20 : f32 to vector<4x128xf32>
    %208 = arith.maximumf %206, %207 : vector<4x128xf32>
    %209 = vector.extract_strided_slice %208 {offsets = [0, 0], sizes = [1, 128], strides = [1, 1]} : vector<4x128xf32> to vector<1x128xf32>
    %210 = vector.extract_strided_slice %208 {offsets = [1, 0], sizes = [1, 128], strides = [1, 1]} : vector<4x128xf32> to vector<1x128xf32>
    %211 = vector.extract_strided_slice %208 {offsets = [2, 0], sizes = [1, 128], strides = [1, 1]} : vector<4x128xf32> to vector<1x128xf32>
    %212 = vector.extract_strided_slice %208 {offsets = [3, 0], sizes = [1, 128], strides = [1, 1]} : vector<4x128xf32> to vector<1x128xf32>
    %213 = tpu.concatenate %209, %210, %211, %212 in 1 : vector<1x128xf32>, vector<1x128xf32>, vector<1x128xf32>, vector<1x128xf32> -> vector<1x512xf32>
    %214 = arith.truncf %213 : vector<1x512xf32> to vector<1x512xbf16>
    %c0_21 = arith.constant 0 : index
    %c0_22 = arith.constant 0 : index
    %215 = vector.load %arg8[%c0_21, %c0_22] : memref<512x512xbf16, #tpu.memory_space<vmem>>, vector<512x512xbf16>
    %cst_23 = arith.constant dense<0.000000e+00> : vector<1x512xf32>
    %216 = tpu.matmul %214, %215, %cst_23 {dimension_numbers = #tpu.dot_dimension_numbers<[1], [0], [0], [1], [0, 0, 1, 1], [], []>} : vector<1x512xbf16>, vector<512x512xbf16>, vector<1x512xf32> -> vector<1x512xf32>
    %c0_24 = arith.constant 0 : index
    %c0_25 = arith.constant 0 : index
    %217 = vector.load %arg9[%c0_24, %c0_25] : memref<1x512xf32, #tpu.memory_space<vmem>>, vector<1x512xf32>
    %218 = arith.mulf %216, %217 : vector<1x512xf32>
    %c0_26 = arith.constant 0 : index
    %c0_27 = arith.constant 0 : index
    %219 = vector.load %arg10[%c0_26, %c0_27] : memref<1x512xf32, #tpu.memory_space<vmem>>, vector<1x512xf32>
    %220 = arith.addf %218, %219 : vector<1x512xf32>
    %cst_28 = arith.constant 0.000000e+00 : f32
    %221 = vector.broadcast %cst_28 : f32 to vector<1x512xf32>
    %222 = arith.maximumf %220, %221 : vector<1x512xf32>
    %223 = arith.truncf %222 : vector<1x512xf32> to vector<1x512xbf16>
    %c0_29 = arith.constant 0 : index
    %c0_30 = arith.constant 0 : index
    %224 = vector.load %arg11[%c0_29, %c0_30] : memref<512x128xbf16, #tpu.memory_space<vmem>>, vector<512x128xbf16>
    %cst_31 = arith.constant dense<0.000000e+00> : vector<1x128xf32>
    %225 = tpu.matmul %223, %224, %cst_31 {dimension_numbers = #tpu.dot_dimension_numbers<[1], [0], [0], [1], [0, 0, 1, 1], [], []>} : vector<1x512xbf16>, vector<512x128xbf16>, vector<1x128xf32> -> vector<1x128xf32>
    %c0_32 = arith.constant 0 : index
    %c0_33 = arith.constant 0 : index
    %226 = vector.load %arg12[%c0_32, %c0_33] : memref<1x128xf32, #tpu.memory_space<vmem>>, vector<1x128xf32>
    %227 = arith.addf %225, %226 : vector<1x128xf32>
    %c0_34 = arith.constant 0 : index
    %c0_35 = arith.constant 0 : index
    %c0_36 = arith.constant 0 : index
    %228 = vector.load %arg13[%c0_34, %c0_35, %c0_36] : memref<1x1x128xf32, #tpu.memory_space<vmem>>, vector<1x1x128xf32>
    %229 = vector.shape_cast %228 : vector<1x1x128xf32> to vector<1x128xf32>
    %230 = vector.shape_cast %227 : vector<1x128xf32> to vector<1x1x128xf32>
    tpu.vector_store %arg13[%c0_34, %c0_35, %c0_36], %230 {strides = array<i32>} : memref<1x1x128xf32, #tpu.memory_space<vmem>>, vector<1x1x128xf32>,
    return
  }
  func.func @transform_0(%arg0: i32) -> (i32, i32, i32) {
    %c0_i32 = arith.constant 0 : i32
    %c0_i32_0 = arith.constant 0 : i32
    %c0_i32_1 = arith.constant 0 : i32
    return %arg0, %c0_i32, %c0_i32_0 : i32, i32, i32
  }
  func.func @transform_1(%arg0: i32) -> (i32, i32) {
    %c0_i32 = arith.constant 0 : i32
    %c0_i32_0 = arith.constant 0 : i32
    %c0_i32_1 = arith.constant 0 : i32
    return %c0_i32, %c0_i32_0 : i32, i32
  }
  func.func @transform_2(%arg0: i32) -> (i32, i32) {
    %c0_i32 = arith.constant 0 : i32
    %c0_i32_0 = arith.constant 0 : i32
    %c0_i32_1 = arith.constant 0 : i32
    return %c0_i32, %c0_i32_0 : i32, i32
  }
  func.func @transform_3(%arg0: i32) -> (i32, i32) {
    %c0_i32 = arith.constant 0 : i32
    %c0_i32_0 = arith.constant 0 : i32
    %c0_i32_1 = arith.constant 0 : i32
    return %c0_i32, %c0_i32_0 : i32, i32
  }
  func.func @transform_4(%arg0: i32) -> (i32, i32) {
    %c0_i32 = arith.constant 0 : i32
    %c0_i32_0 = arith.constant 0 : i32
    %c0_i32_1 = arith.constant 0 : i32
    return %c0_i32, %c0_i32_0 : i32, i32
  }
  func.func @transform_5(%arg0: i32) -> (i32, i32) {
    %c0_i32 = arith.constant 0 : i32
    %c0_i32_0 = arith.constant 0 : i32
    %c0_i32_1 = arith.constant 0 : i32
    return %c0_i32, %c0_i32_0 : i32, i32
  }
  func.func @transform_6(%arg0: i32) -> (i32, i32) {
    %c0_i32 = arith.constant 0 : i32
    %c0_i32_0 = arith.constant 0 : i32
    %c0_i32_1 = arith.constant 0 : i32
    return %c0_i32, %c0_i32_0 : i32, i32
  }
  func.func @transform_7(%arg0: i32) -> (i32, i32) {
    %c0_i32 = arith.constant 0 : i32
    %c0_i32_0 = arith.constant 0 : i32
    %c0_i32_1 = arith.constant 0 : i32
    return %c0_i32, %c0_i32_0 : i32, i32
  }
  func.func @transform_8(%arg0: i32) -> (i32, i32) {
    %c0_i32 = arith.constant 0 : i32
    %c0_i32_0 = arith.constant 0 : i32
    %c0_i32_1 = arith.constant 0 : i32
    return %c0_i32, %c0_i32_0 : i32, i32
  }
  func.func @transform_9(%arg0: i32) -> (i32, i32) {
    %c0_i32 = arith.constant 0 : i32
    %c0_i32_0 = arith.constant 0 : i32
    %c0_i32_1 = arith.constant 0 : i32
    return %c0_i32, %c0_i32_0 : i32, i32
  }
  func.func @transform_10(%arg0: i32) -> (i32, i32) {
    %c0_i32 = arith.constant 0 : i32
    %c0_i32_0 = arith.constant 0 : i32
    %c0_i32_1 = arith.constant 0 : i32
    return %c0_i32, %c0_i32_0 : i32, i32
  }
  func.func @transform_11(%arg0: i32) -> (i32, i32) {
    %c0_i32 = arith.constant 0 : i32
    %c0_i32_0 = arith.constant 0 : i32
    %c0_i32_1 = arith.constant 0 : i32
    return %c0_i32, %c0_i32_0 : i32, i32
  }
  func.func @transform_12(%arg0: i32) -> (i32, i32, i32) {
    %c0_i32 = arith.constant 0 : i32
    %c0_i32_0 = arith.constant 0 : i32
    %c0_i32_1 = arith.constant 0 : i32
    return %arg0, %c0_i32, %c0_i32_0 : i32, i32, i32
  }
}

</mosaic_0001>

<llo_original>
// kernel: enhanced_cnn_forward.1
$region0: #{enhanced_cnn_forward.1}
  #allocation0 [shape = 'u32[]', space=smem, size = 0x4, offset = 0x4, fixed_abs, tag = 'smem constant byte address 0x4 - core index']
  #allocation1 [shape = 'u32[144,128]{1,0:T(1,128)}', space=vmem, size = 0x12000, scoped, tag = 'internal scratch']
  %s0 = inlined_call_operand.vmem [shape: f32[2,4,10], index: 0, kind: input, shape index: {}]
  %s1 = inlined_call_operand.vmem [shape: f32[3,64], index: 1, kind: input, shape index: {}]
  %s2 = inlined_call_operand.vmem [shape: f32[1,64], index: 2, kind: input, shape index: {}]
  %s3 = inlined_call_operand.vmem [shape: f32[1,64], index: 3, kind: input, shape index: {}]
  %s4 = inlined_call_operand.hbm [shape: bf16[256,256], index: 4, kind: input, shape index: {}]
  %s5 = inlined_call_operand.vmem [shape: f32[1,256], index: 5, kind: input, shape index: {}]
  %s6 = inlined_call_operand.vmem [shape: f32[1,256], index: 6, kind: input, shape index: {}]
  %s7 = inlined_call_operand.hbm [shape: bf16[512,512], index: 7, kind: input, shape index: {}]
  %s8 = inlined_call_operand.vmem [shape: f32[1,512], index: 8, kind: input, shape index: {}]
  %s9 = inlined_call_operand.vmem [shape: f32[1,512], index: 9, kind: input, shape index: {}]
  %s10 = inlined_call_operand.hbm [shape: bf16[512,128], index: 10, kind: input, shape index: {}]
  %s11 = inlined_call_operand.vmem [shape: f32[1,128], index: 11, kind: input, shape index: {}]
  %s12 = inlined_call_operand.hbm [shape: f32[2,1,128], index: 12, kind: output, shape index: {}]
  %s13 = sld [smem:[#allocation0]]
  $region93: #{enhanced_cnn_forward.1} parent=0
    _
  %s15 = ssub.s32 1, %s13
  %s16 = scalar_select 0, %s15, %s13
  $region1: #{enhanced_cnn_forward.1} parent=0
    #allocation2 [shape = 'u8[131072]{0}', space=vmem, size = 0x20000, scoped, tag = 'input window, operand 4, single buffered']
    #allocation3 [shape = 's32[2]{0}', space=sflag, size = 0x8, scoped, tag = 'scoped memory for enhanced_cnn_forward.1']
    #allocation4 [shape = 's32[2]{0}', space=sflag, size = 0x8, scoped, tag = 'scoped memory for enhanced_cnn_forward.1']
    #allocation5 [shape = 'u8[524288]{0}', space=vmem, size = 0x80000, scoped, tag = 'input window, operand 7, single buffered']
    #allocation6 [shape = 's32[1]{0}', space=sflag, size = 0x4, scoped, tag = 'scoped memory for enhanced_cnn_forward.1']
    #allocation7 [shape = 'u8[131072]{0}', space=vmem, size = 0x20000, scoped, tag = 'input window, operand 10, single buffered']
    #allocation8 [shape = 'u8[1024]{0}', space=vmem, size = 0x400, scoped, tag = 'output window, operand 0']
    %17 = vsyncpa [#allocation3], 0
    %18 = vsyncpa [#allocation6], 0
    %19 = vsyncpa [#allocation4], 0
    %s20 = scalar_lea.sflag [#allocation4], 1
    %21 = vsyncpa %s20, 0
    loop: start=0, step=1, limit=4
    $region2: #{enhanced_cnn_forward.1} parent=1 // loop_pre_header
      _
    $region3: #{enhanced_cnn_forward.1} parent=1 // loop_header
      %s23 = sphi 0, %s27
      %p24 = scmp.ge.s32.totalorder %s23, 4
      %s33 = sphi 0, %s35
      %s36 = sphi 0, %s33
      %s37 = sphi 0, %s36
      %s53 = sphi 0, %s37
      %s57 = sphi 0, %s57
      %s59 = sphi 0, %s57
      %s60 = sphi 0, %s59
      %s74 = sphi 0, %s60
      %s78 = sphi 0, %s78
      %s80 = sphi 0, %s78
      %s81 = sphi 0, %s80
      %s95 = sphi 0, %s81
      %s99 = sphi 0, %s99
      %s101 = sphi 0, %s99
      %s102 = sphi 0, %s101
      %s116 = sphi 0, %s102
      %s120 = sphi 0, %s120
      %s122 = sphi 0, %s120
      %s123 = sphi 0, %s122
      %s137 = sphi 0, %s123
      %s141 = sphi 0, %s141
      %s143 = sphi 0, %s141
      %s144 = sphi 0, %s143
      %s158 = sphi 0, %s144
      %s162 = sphi 0, %s162
      %s164 = sphi 0, %s162
      %s165 = sphi 0, %s164
      %s179 = sphi 0, %s165
      %s183 = sphi 0, %s183
      %s185 = sphi 0, %s183
      %s186 = sphi 0, %s185
      %s200 = sphi 0, %s186
      %s204 = sphi 0, %s204
      %s206 = sphi 0, %s204
      %s207 = sphi 0, %s206
      %s221 = sphi 0, %s207
      %s225 = sphi 0, %s225
      %s227 = sphi 0, %s225
      %s228 = sphi 0, %s227
      %s242 = sphi 0, %s228
      %s246 = sphi 0, %s246
      %s248 = sphi 0, %s246
      %s249 = sphi 0, %s248
      %s263 = sphi 0, %s249
      %s267 = sphi 0, %s267
      %s269 = sphi 0, %s267
      %s270 = sphi 0, %s269
      %s284 = sphi 0, %s270
      %s290 = sphi 0, %s292
      %s293 = sphi 0, %s290
      %s294 = sphi 0, %s293
      %s310 = sphi 0, %s294
    $region4: #{enhanced_cnn_forward.1} parent=1 // loop_header_branch
      %26 = sbr.rel (%p24) target = $region8
    $region5: #{enhanced_cnn_forward.1} parent=1 // loop_body
      %s28 = ssub.s32 %s23, 1
      %s29 = ssub.s32 %s23, 2
      %s30 = sadd.s32 %s23, 1
      %s31 = ssub.s32 %s23, %s30
      %p32 = scmp.eq.s32.totalorder %s31, 0
      %s34 = sadd.s32 %s33, 1
      %s35 = scalar_select %p32, %s33, %s34
      %p38 = pneg %p32
      %p39 = scmp.eq.s32.totalorder %s23, 1
      %p40 = por %p38, %p39
      %p41 = scmp.ne.s32.totalorder %s33, %s36
      %p42 = scmp.eq.s32.totalorder %s23, 0
      %p43 = por %p41, %p42
      %p44 = scmp.ne.s32.totalorder %s33, %s36
      %p45 = scmp.eq.s32.totalorder %s28, 1
      %p46 = por %p44, %p45
      %p47 = scmp.ne.s32.totalorder %s36, %s37
      %p48 = scmp.eq.s32.totalorder %s28, 0
      %p49 = por %p47, %p48
      %p50 = scmp.ne.s32.totalorder %s36, %s37
      %p51 = scmp.eq.s32.totalorder %s29, 1
      %p52 = por %p50, %p51
      %p54 = scmp.ne.s32.totalorder %s37, %s53
      %p55 = scmp.eq.s32.totalorder %s29, 0
      %p56 = por %p54, %p55
      %s58 = sadd.s32 %s57, 1
      %p61 = scmp.eq.s32.totalorder %s23, 1
      %p62 = scmp.ne.s32.totalorder %s57, %s59
      %p63 = scmp.eq.s32.totalorder %s23, 0
      %p64 = por %p62, %p63
      %p65 = scmp.ne.s32.totalorder %s57, %s59
      %p66 = scmp.eq.s32.totalorder %s28, 1
      %p67 = por %p65, %p66
      %p68 = scmp.ne.s32.totalorder %s59, %s60
      %p69 = scmp.eq.s32.totalorder %s28, 0
      %p70 = por %p68, %p69
      %p71 = scmp.ne.s32.totalorder %s59, %s60
      %p72 = scmp.eq.s32.totalorder %s29, 1
      %p73 = por %p71, %p72
      %p75 = scmp.ne.s32.totalorder %s60, %s74
      %p76 = scmp.eq.s32.totalorder %s29, 0
      %p77 = por %p75, %p76
      %s79 = sadd.s32 %s78, 1
      %p82 = scmp.eq.s32.totalorder %s23, 1
      %p83 = scmp.ne.s32.totalorder %s78, %s80
      %p84 = scmp.eq.s32.totalorder %s23, 0
      %p85 = por %p83, %p84
      %p86 = scmp.ne.s32.totalorder %s78, %s80
      %p87 = scmp.eq.s32.totalorder %s28, 1
      %p88 = por %p86, %p87
      %p89 = scmp.ne.s32.totalorder %s80, %s81
      %p90 = scmp.eq.s32.totalorder %s28, 0
      %p91 = por %p89, %p90
      %p92 = scmp.ne.s32.totalorder %s80, %s81
      %p93 = scmp.eq.s32.totalorder %s29, 1
      %p94 = por %p92, %p93
      %p96 = scmp.ne.s32.totalorder %s81, %s95
      %p97 = scmp.eq.s32.totalorder %s29, 0
      %p98 = por %p96, %p97
      %s100 = sadd.s32 %s99, 1
      %p103 = scmp.eq.s32.totalorder %s23, 1
      %p104 = scmp.ne.s32.totalorder %s99, %s101
      %p105 = scmp.eq.s32.totalorder %s23, 0
      %p106 = por %p104, %p105
      %p107 = scmp.ne.s32.totalorder %s99, %s101
      %p108 = scmp.eq.s32.totalorder %s28, 1
      %p109 = por %p107, %p108
      %p110 = scmp.ne.s32.totalorder %s101, %s102
      %p111 = scmp.eq.s32.totalorder %s28, 0
      %p112 = por %p110, %p111
      %p113 = scmp.ne.s32.totalorder %s101, %s102
      %p114 = scmp.eq.s32.totalorder %s29, 1
      %p115 = por %p113, %p114
      %p117 = scmp.ne.s32.totalorder %s102, %s116
      %p118 = scmp.eq.s32.totalorder %s29, 0
      %p119 = por %p117, %p118
      %s121 = sadd.s32 %s120, 1
      %p124 = scmp.eq.s32.totalorder %s23, 1
      %p125 = scmp.ne.s32.totalorder %s120, %s122
      %p126 = scmp.eq.s32.totalorder %s23, 0
      %p127 = por %p125, %p126
      %p128 = scmp.ne.s32.totalorder %s120, %s122
      %p129 = scmp.eq.s32.totalorder %s28, 1
      %p130 = por %p128, %p129
      %p131 = scmp.ne.s32.totalorder %s122, %s123
      %p132 = scmp.eq.s32.totalorder %s28, 0
      %p133 = por %p131, %p132
      %p134 = scmp.ne.s32.totalorder %s122, %s123
      %p135 = scmp.eq.s32.totalorder %s29, 1
      %p136 = por %p134, %p135
      %p138 = scmp.ne.s32.totalorder %s123, %s137
      %p139 = scmp.eq.s32.totalorder %s29, 0
      %p140 = por %p138, %p139
      %s142 = sadd.s32 %s141, 1
      %p145 = scmp.eq.s32.totalorder %s23, 1
      %p146 = scmp.ne.s32.totalorder %s141, %s143
      %p147 = scmp.eq.s32.totalorder %s23, 0
      %p148 = por %p146, %p147
      %p149 = scmp.ne.s32.totalorder %s141, %s143
      %p150 = scmp.eq.s32.totalorder %s28, 1
      %p151 = por %p149, %p150
      %p152 = scmp.ne.s32.totalorder %s143, %s144
      %p153 = scmp.eq.s32.totalorder %s28, 0
      %p154 = por %p152, %p153
      %p155 = scmp.ne.s32.totalorder %s143, %s144
      %p156 = scmp.eq.s32.totalorder %s29, 1
      %p157 = por %p155, %p156
      %p159 = scmp.ne.s32.totalorder %s144, %s158
      %p160 = scmp.eq.s32.totalorder %s29, 0
      %p161 = por %p159, %p160
      %s163 = sadd.s32 %s162, 1
      %p166 = scmp.eq.s32.totalorder %s23, 1
      %p167 = scmp.ne.s32.totalorder %s162, %s164
      %p168 = scmp.eq.s32.totalorder %s23, 0
      %p169 = por %p167, %p168
      %p170 = scmp.ne.s32.totalorder %s162, %s164
      %p171 = scmp.eq.s32.totalorder %s28, 1
      %p172 = por %p170, %p171
      %p173 = scmp.ne.s32.totalorder %s164, %s165
      %p174 = scmp.eq.s32.totalorder %s28, 0
      %p175 = por %p173, %p174
      %p176 = scmp.ne.s32.totalorder %s164, %s165
      %p177 = scmp.eq.s32.totalorder %s29, 1
      %p178 = por %p176, %p177
      %p180 = scmp.ne.s32.totalorder %s165, %s179
      %p181 = scmp.eq.s32.totalorder %s29, 0
      %p182 = por %p180, %p181
      %s184 = sadd.s32 %s183, 1
      %p187 = scmp.eq.s32.totalorder %s23, 1
      %p188 = scmp.ne.s32.totalorder %s183, %s185
      %p189 = scmp.eq.s32.totalorder %s23, 0
      %p190 = por %p188, %p189
      %p191 = scmp.ne.s32.totalorder %s183, %s185
      %p192 = scmp.eq.s32.totalorder %s28, 1
      %p193 = por %p191, %p192
      %p194 = scmp.ne.s32.totalorder %s185, %s186
      %p195 = scmp.eq.s32.totalorder %s28, 0
      %p196 = por %p194, %p195
      %p197 = scmp.ne.s32.totalorder %s185, %s186
      %p198 = scmp.eq.s32.totalorder %s29, 1
      %p199 = por %p197, %p198
      %p201 = scmp.ne.s32.totalorder %s186, %s200
      %p202 = scmp.eq.s32.totalorder %s29, 0
      %p203 = por %p201, %p202
      %s205 = sadd.s32 %s204, 1
      %p208 = scmp.eq.s32.totalorder %s23, 1
      %p209 = scmp.ne.s32.totalorder %s204, %s206
      %p210 = scmp.eq.s32.totalorder %s23, 0
      %p211 = por %p209, %p210
      %p212 = scmp.ne.s32.totalorder %s204, %s206
      %p213 = scmp.eq.s32.totalorder %s28, 1
      %p214 = por %p212, %p213
      %p215 = scmp.ne.s32.totalorder %s206, %s207
      %p216 = scmp.eq.s32.totalorder %s28, 0
      %p217 = por %p215, %p216
      %p218 = scmp.ne.s32.totalorder %s206, %s207
      %p219 = scmp.eq.s32.totalorder %s29, 1
      %p220 = por %p218, %p219
      %p222 = scmp.ne.s32.totalorder %s207, %s221
      %p223 = scmp.eq.s32.totalorder %s29, 0
      %p224 = por %p222, %p223
      %s226 = sadd.s32 %s225, 1
      %p229 = scmp.eq.s32.totalorder %s23, 1
      %p230 = scmp.ne.s32.totalorder %s225, %s227
      %p231 = scmp.eq.s32.totalorder %s23, 0
      %p232 = por %p230, %p231
      %p233 = scmp.ne.s32.totalorder %s225, %s227
      %p234 = scmp.eq.s32.totalorder %s28, 1
      %p235 = por %p233, %p234
      %p236 = scmp.ne.s32.totalorder %s227, %s228
      %p237 = scmp.eq.s32.totalorder %s28, 0
      %p238 = por %p236, %p237
      %p239 = scmp.ne.s32.totalorder %s227, %s228
      %p240 = scmp.eq.s32.totalorder %s29, 1
      %p241 = por %p239, %p240
      %p243 = scmp.ne.s32.totalorder %s228, %s242
      %p244 = scmp.eq.s32.totalorder %s29, 0
      %p245 = por %p243, %p244
      %s247 = sadd.s32 %s246, 1
      %p250 = scmp.eq.s32.totalorder %s23, 1
      %p251 = scmp.ne.s32.totalorder %s246, %s248
      %p252 = scmp.eq.s32.totalorder %s23, 0
      %p253 = por %p251, %p252
      %p254 = scmp.ne.s32.totalorder %s246, %s248
      %p255 = scmp.eq.s32.totalorder %s28, 1
      %p256 = por %p254, %p255
      %p257 = scmp.ne.s32.totalorder %s248, %s249
      %p258 = scmp.eq.s32.totalorder %s28, 0
      %p259 = por %p257, %p258
      %p260 = scmp.ne.s32.totalorder %s248, %s249
      %p261 = scmp.eq.s32.totalorder %s29, 1
      %p262 = por %p260, %p261
      %p264 = scmp.ne.s32.totalorder %s249, %s263
      %p265 = scmp.eq.s32.totalorder %s29, 0
      %p266 = por %p264, %p265
      %s268 = sadd.s32 %s267, 1
      %p271 = scmp.eq.s32.totalorder %s23, 1
      %p272 = scmp.ne.s32.totalorder %s267, %s269
      %p273 = scmp.eq.s32.totalorder %s23, 0
      %p274 = por %p272, %p273
      %p275 = scmp.ne.s32.totalorder %s267, %s269
      %p276 = scmp.eq.s32.totalorder %s28, 1
      %p277 = por %p275, %p276
      %p278 = scmp.ne.s32.totalorder %s269, %s270
      %p279 = scmp.eq.s32.totalorder %s28, 0
      %p280 = por %p278, %p279
      %p281 = scmp.ne.s32.totalorder %s269, %s270
      %p282 = scmp.eq.s32.totalorder %s29, 1
      %p283 = por %p281, %p282
      %p285 = scmp.ne.s32.totalorder %s270, %s284
      %p286 = scmp.eq.s32.totalorder %s29, 0
      %p287 = por %p285, %p286
      %s288 = ssub.s32 %s23, %s30
      %p289 = scmp.eq.s32.totalorder %s288, 0
      %s291 = sadd.s32 %s290, 1
      %s292 = scalar_select %p289, %s290, %s291
      %p295 = pneg %p289
      %p296 = scmp.eq.s32.totalorder %s23, 1
      %p297 = por %p295, %p296
      %p298 = scmp.ne.s32.totalorder %s290, %s293
      %p299 = scmp.eq.s32.totalorder %s23, 0
      %p300 = por %p298, %p299
      %p301 = scmp.ne.s32.totalorder %s290, %s293
      %p302 = scmp.eq.s32.totalorder %s28, 1
      %p303 = por %p301, %p302
      %p304 = scmp.ne.s32.totalorder %s293, %s294
      %p305 = scmp.eq.s32.totalorder %s28, 0
      %p306 = por %p304, %p305
      %p307 = scmp.ne.s32.totalorder %s293, %s294
      %p308 = scmp.eq.s32.totalorder %s29, 1
      %p309 = por %p307, %p308
      %p311 = scmp.ne.s32.totalorder %s294, %s310
      %p312 = scmp.eq.s32.totalorder %s29, 0
      %p313 = por %p311, %p312
      %p314 = scmp.le.s32.totalorder 1, %s23
      %p315 = scmp.lt.s32.totalorder %s23, 3
      %p316 = pnand %p314, %p315
      %p317 = pneg %p316
      // Predicated region
      $region9: #{enhanced_cnn_forward.1} parent=5 // pred_check
        _
      $region10: #{enhanced_cnn_forward.1} parent=5 // pred_check_branch
        %319 = sbr.rel (%p316) target = $region12
      $region11: #{enhanced_cnn_forward.1} parent=5 // pred_region
        %s320 = ssub.s32 %s23, 1
        // Predicated region
        $region13: #{enhanced_cnn_forward.1} parent=11 // pred_check
          %p321 = pneg %p70
        $region14: #{enhanced_cnn_forward.1} parent=11 // pred_check_branch
          %323 = sbr.rel (%p321) target = $region16
        $region15: #{enhanced_cnn_forward.1} parent=11 // pred_region
          _
        $region16: #{enhanced_cnn_forward.1} parent=11 // pred_fallthru
          _
        // Predicated region
        $region17: #{enhanced_cnn_forward.1} parent=11 // pred_check
          %p324 = pneg %p91
        $region18: #{enhanced_cnn_forward.1} parent=11 // pred_check_branch
          %326 = sbr.rel (%p324) target = $region20
        $region19: #{enhanced_cnn_forward.1} parent=11 // pred_region
          _
        $region20: #{enhanced_cnn_forward.1} parent=11 // pred_fallthru
          _
        // Predicated region
        $region21: #{enhanced_cnn_forward.1} parent=11 // pred_check
          %p327 = pneg %p112
        $region22: #{enhanced_cnn_forward.1} parent=11 // pred_check_branch
          %329 = sbr.rel (%p327) target = $region24
        $region23: #{enhanced_cnn_forward.1} parent=11 // pred_region
          _
        $region24: #{enhanced_cnn_forward.1} parent=11 // pred_fallthru
          _
        // Predicated region
        $region25: #{enhanced_cnn_forward.1} parent=11 // pred_check
          %p330 = pneg %p133
        $region26: #{enhanced_cnn_forward.1} parent=11 // pred_check_branch
          %332 = sbr.rel (%p330) target = $region28
        $region27: #{enhanced_cnn_forward.1} parent=11 // pred_region
          %s334 = ssub.s32 4096, 4096
          %335 = vsyncadd [#allocation3], %s334
          %s336 = sshll.u32 [#allocation2], 4
          %s337 = int_to_ptr.vmem [resolvable:$true] %s336
          %342 = dma.hbm_to_vmem [thread:$0]  %s4, 4096, %s337, [#allocation3], 128, 128, 8
        $region28: #{enhanced_cnn_forward.1} parent=11 // pred_fallthru
          _
        // Predicated region
        $region29: #{enhanced_cnn_forward.1} parent=11 // pred_check
          %p343 = pneg %p154
        $region30: #{enhanced_cnn_forward.1} parent=11 // pred_check_branch
          %345 = sbr.rel (%p343) target = $region32
        $region31: #{enhanced_cnn_forward.1} parent=11 // pred_region
          _
        $region32: #{enhanced_cnn_forward.1} parent=11 // pred_fallthru
          _
        // Predicated region
        $region33: #{enhanced_cnn_forward.1} parent=11 // pred_check
          %p346 = pneg %p175
        $region34: #{enhanced_cnn_forward.1} parent=11 // pred_check_branch
          %348 = sbr.rel (%p346) target = $region36
        $region35: #{enhanced_cnn_forward.1} parent=11 // pred_region
          _
        $region36: #{enhanced_cnn_forward.1} parent=11 // pred_fallthru
          _
        // Predicated region
        $region37: #{enhanced_cnn_forward.1} parent=11 // pred_check
          %p349 = pneg %p196
        $region38: #{enhanced_cnn_forward.1} parent=11 // pred_check_branch
          %351 = sbr.rel (%p349) target = $region40
        $region39: #{enhanced_cnn_forward.1} parent=11 // pred_region
          %s353 = ssub.s32 16384, 16384
          %354 = vsyncadd [#allocation6], %s353
          %s355 = sshll.u32 [#allocation5], 4
          %s356 = int_to_ptr.vmem [resolvable:$true] %s355
          %361 = dma.hbm_to_vmem [thread:$0]  %s7, 16384, %s356, [#allocation6], 256, 256, 16
        $region40: #{enhanced_cnn_forward.1} parent=11 // pred_fallthru
          _
        // Predicated region
        $region41: #{enhanced_cnn_forward.1} parent=11 // pred_check
          %p362 = pneg %p217
        $region42: #{enhanced_cnn_forward.1} parent=11 // pred_check_branch
          %364 = sbr.rel (%p362) target = $region44
        $region43: #{enhanced_cnn_forward.1} parent=11 // pred_region
          _
        $region44: #{enhanced_cnn_forward.1} parent=11 // pred_fallthru
          _
        // Predicated region
        $region45: #{enhanced_cnn_forward.1} parent=11 // pred_check
          %p365 = pneg %p238
        $region46: #{enhanced_cnn_forward.1} parent=11 // pred_check_branch
          %367 = sbr.rel (%p365) target = $region48
        $region47: #{enhanced_cnn_forward.1} parent=11 // pred_region
          _
        $region48: #{enhanced_cnn_forward.1} parent=11 // pred_fallthru
          _
        // Predicated region
        $region49: #{enhanced_cnn_forward.1} parent=11 // pred_check
          %p368 = pneg %p259
        $region50: #{enhanced_cnn_forward.1} parent=11 // pred_check_branch
          %370 = sbr.rel (%p368) target = $region52
        $region51: #{enhanced_cnn_forward.1} parent=11 // pred_region
          %s372 = ssub.s32 4096, 4096
          %373 = vsyncadd [#allocation6], %s372
          %s374 = sshll.u32 [#allocation7], 4
          %s375 = int_to_ptr.vmem [resolvable:$true] %s374
          %380 = dma.hbm_to_vmem [thread:$0]  %s10, 4096, %s375, [#allocation6], 64, 64, 4
        $region52: #{enhanced_cnn_forward.1} parent=11 // pred_fallthru
          _
        // Predicated region
        $region53: #{enhanced_cnn_forward.1} parent=11 // pred_check
          %p381 = pneg %p280
        $region54: #{enhanced_cnn_forward.1} parent=11 // pred_check_branch
          %383 = sbr.rel (%p381) target = $region56
        $region55: #{enhanced_cnn_forward.1} parent=11 // pred_region
          _
        $region56: #{enhanced_cnn_forward.1} parent=11 // pred_fallthru
          _
      $region12: #{enhanced_cnn_forward.1} parent=5 // pred_fallthru
        _
      %p384 = scmp.lt.s32.totalorder %s23, 2
      // Predicated region
      $region57: #{enhanced_cnn_forward.1} parent=5 // pred_check
        %p385 = pneg %p384
      $region58: #{enhanced_cnn_forward.1} parent=5 // pred_check_branch
        %387 = sbr.rel (%p385) target = $region60
      $region59: #{enhanced_cnn_forward.1} parent=5 // pred_region
        // Predicated region
        $region61: #{enhanced_cnn_forward.1} parent=59 // pred_check
          %p388 = pneg %p43
        $region62: #{enhanced_cnn_forward.1} parent=59 // pred_check_branch
          %390 = sbr.rel (%p388) target = $region64
        $region63: #{enhanced_cnn_forward.1} parent=59 // pred_region
          %p391 = scmp.lt.s32.totalorder %s23, 1
          %s392 = scalar_select %p391, %s23, 1
          %s393 = smul.addr %s392, 4
          %s394 = scalar_lea.vmem %s0, %s393
        $region64: #{enhanced_cnn_forward.1} parent=59 // pred_fallthru
          _
      $region60: #{enhanced_cnn_forward.1} parent=5 // pred_fallthru
        _
      %p395 = scmp.le.s32.totalorder 1, %s23
      %p396 = scmp.lt.s32.totalorder %s23, 3
      %p397 = pnand %p395, %p396
      %p398 = pneg %p397
      // Predicated region
      $region65: #{enhanced_cnn_forward.1} parent=5 // pred_check
        _
      $region66: #{enhanced_cnn_forward.1} parent=5 // pred_check_branch
        %400 = sbr.rel (%p397) target = $region68
      $region67: #{enhanced_cnn_forward.1} parent=5 // pred_region
        %s401 = ssub.s32 %s23, 1
        // Predicated region
        $region69: #{enhanced_cnn_forward.1} parent=67 // pred_check
          %p402 = pneg %p133
        $region70: #{enhanced_cnn_forward.1} parent=67 // pred_check_branch
          %404 = sbr.rel (%p402) target = $region72
        $region71: #{enhanced_cnn_forward.1} parent=67 // pred_region
          %405 = dma.done [#allocation3], 4096
        $region72: #{enhanced_cnn_forward.1} parent=67 // pred_fallthru
          _
        // Predicated region
        $region73: #{enhanced_cnn_forward.1} parent=67 // pred_check
          %p406 = pneg %p196
        $region74: #{enhanced_cnn_forward.1} parent=67 // pred_check_branch
          %408 = sbr.rel (%p406) target = $region76
        $region75: #{enhanced_cnn_forward.1} parent=67 // pred_region
          %409 = dma.done [#allocation6], 16384
        $region76: #{enhanced_cnn_forward.1} parent=67 // pred_fallthru
          _
        // Predicated region
        $region77: #{enhanced_cnn_forward.1} parent=67 // pred_check
          %p410 = pneg %p259
        $region78: #{enhanced_cnn_forward.1} parent=67 // pred_check_branch
          %412 = sbr.rel (%p410) target = $region80
        $region79: #{enhanced_cnn_forward.1} parent=67 // pred_region
          %413 = dma.done [#allocation6], 4096
        $region80: #{enhanced_cnn_forward.1} parent=67 // pred_fallthru
          _
        %p414 = scmp.lt.s32.totalorder %s28, 1
        %s415 = scalar_select %p414, %s28, 1
        %s416 = smul.addr %s415, 4
        %s417 = scalar_lea.vmem %s0, %s416
        %p418 = pneg %p49
        %p419 = pneg %p46
        %p420 = pneg %p70
        %p421 = pneg %p67
        %p422 = pneg %p91
        %p423 = pneg %p88
        %p424 = pneg %p112
        %p425 = pneg %p109
        %p426 = pneg %p133
        %p427 = pneg %p130
        %p428 = pneg %p154
        %p429 = pneg %p151
        %p430 = pneg %p175
        %p431 = pneg %p172
        %p432 = pneg %p196
        %p433 = pneg %p193
        %p434 = pneg %p217
        %p435 = pneg %p214
        %p436 = pneg %p238
        %p437 = pneg %p235
        %p438 = pneg %p259
        %p439 = pneg %p256
        %p440 = pneg %p280
        %p441 = pneg %p277
        %p442 = pneg %p306
        %p443 = pneg %p303
        %s444 = sand.u32 %s293, 1
        %s445 = scalar_lea.sflag [#allocation4], %s444
        %s446 = sand.u32 %s293, 1
        %s447 = scalar_lea.vmem [#allocation8], %s446
        %p448 = scmp.lt.s32.totalorder %s28, 1
        %s449 = scalar_select %p448, %s28, 1
        %s450 = smul.addr %s449, 4
        %s451 = scalar_lea.vmem %s0, %s450
        %v453 = vld [vmem:[%s451] sm:$0xf]
        %v454 = vld [vmem:[%s1] sm:$0x7]
        %v455 = vld [vmem:[%s2] sm:$0x1]
        %v456 = vld [vmem:[%s3] sm:$0x1]
        %458 = vset.pattern.permute.xlu0 0
        %459 = vperm.xlu0 %458, %v453
        %v460 = vpop.permute.xlu0 %459
        %v462 = vlaneseq
        %v463 = vshrl.u32 %v462, 7
        %v464 = vsub.s32 0, %v463
        %v465 = vrot.slane %v454, %v464
        %v466 = vmul.f32 %v460, %v465
        %467 = vset.pattern.permute.xlu0 1
        %468 = vperm.xlu0 %467, %v453
        %v469 = vpop.permute.xlu0 %468
        %v471 = vlaneseq
        %v472 = vshrl.u32 %v471, 7
        %v473 = vsub.s32 1, %v472
        %v474 = vrot.slane %v454, %v473
        %v475 = vmul.f32 %v469, %v474
        %v476 = vadd.f32 %v466, %v475
        %477 = vset.pattern.permute.xlu0 2
        %478 = vperm.xlu0 %477, %v453
        %v479 = vpop.permute.xlu0 %478
        %v481 = vlaneseq
        %v482 = vshrl.u32 %v481, 7
        %v483 = vsub.s32 2, %v482
        %v484 = vrot.slane %v454, %v483
        %v485 = vmul.f32 %v479, %v484
        %v486 = vadd.f32 %v476, %v485
        %v488 = vlaneseq
        %v489 = vshrl.u32 %v488, 7
        %v490 = vsub.s32 0, %v489
        %v491 = vrot.slane %v455, %v490
        %v493 = vmul.f32 %v486, %v491
        %v495 = vlaneseq
        %v496 = vshrl.u32 %v495, 7
        %v497 = vsub.s32 0, %v496
        %v498 = vrot.slane %v456, %v497
        %v500 = vadd.f32 %v493, %v498
        %v501 = vmul.f32 %v469, %v465
        %v502 = vmul.f32 %v479, %v474
        %v503 = vadd.f32 %v501, %v502
        %504 = vset.pattern.permute.xlu0 3
        %505 = vperm.xlu0 %504, %v453
        %v506 = vpop.permute.xlu0 %505
        %v508 = vmul.f32 %v506, %v484
        %v509 = vadd.f32 %v503, %v508
        %v510 = vmul.f32 %v509, %v491
        %v511 = vadd.f32 %v510, %v498
        %v512 = vmax.f32 %v500, %v511
        %v513 = vmax.f32 %v512, 0.0
        %v514 = vmul.f32 %v479, %v465
        %v515 = vmul.f32 %v506, %v474
        %v516 = vadd.f32 %v514, %v515
        %517 = vset.pattern.permute.xlu0 4
        %518 = vperm.xlu0 %517, %v453
        %v519 = vpop.permute.xlu0 %518
        %v521 = vmul.f32 %v519, %v484
        %v522 = vadd.f32 %v516, %v521
        %v523 = vmul.f32 %v522, %v491
        %v524 = vadd.f32 %v523, %v498
        %v525 = vmul.f32 %v506, %v465
        %v526 = vmul.f32 %v519, %v474
        %v527 = vadd.f32 %v525, %v526
        %528 = vset.pattern.permute.xlu0 5
        %529 = vperm.xlu0 %528, %v453
        %v530 = vpop.permute.xlu0 %529
        %v532 = vmul.f32 %v530, %v484
        %v533 = vadd.f32 %v527, %v532
        %v534 = vmul.f32 %v533, %v491
        %v535 = vadd.f32 %v534, %v498
        %v536 = vmax.f32 %v524, %v535
        %v537 = vmax.f32 %v536, 0.0
        %v538 = vmul.f32 %v519, %v465
        %v539 = vmul.f32 %v530, %v474
        %v540 = vadd.f32 %v538, %v539
        %541 = vset.pattern.permute.xlu0 6
        %542 = vperm.xlu0 %541, %v453
        %v543 = vpop.permute.xlu0 %542
        %v545 = vmul.f32 %v543, %v484
        %v546 = vadd.f32 %v540, %v545
        %v547 = vmul.f32 %v546, %v491
        %v548 = vadd.f32 %v547, %v498
        %v549 = vmul.f32 %v530, %v465
        %v550 = vmul.f32 %v543, %v474
        %v551 = vadd.f32 %v549, %v550
        %552 = vset.pattern.permute.xlu0 7
        %553 = vperm.xlu0 %552, %v453
        %v554 = vpop.permute.xlu0 %553
        %v556 = vmul.f32 %v554, %v484
        %v557 = vadd.f32 %v551, %v556
        %v558 = vmul.f32 %v557, %v491
        %v559 = vadd.f32 %v558, %v498
        %v560 = vmax.f32 %v548, %v559
        %v561 = vmax.f32 %v560, 0.0
        %v562 = vmul.f32 %v543, %v465
        %v563 = vmul.f32 %v554, %v474
        %v564 = vadd.f32 %v562, %v563
        %565 = vset.pattern.permute.xlu0 8
        %566 = vperm.xlu0 %565, %v453
        %v567 = vpop.permute.xlu0 %566
        %v569 = vmul.f32 %v567, %v484
        %v570 = vadd.f32 %v564, %v569
        %v571 = vmul.f32 %v570, %v491
        %v572 = vadd.f32 %v571, %v498
        %v573 = vmul.f32 %v554, %v465
        %v574 = vmul.f32 %v567, %v474
        %v575 = vadd.f32 %v573, %v574
        %576 = vset.pattern.permute.xlu0 9
        %577 = vperm.xlu0 %576, %v453
        %v578 = vpop.permute.xlu0 %577
        %v580 = vmul.f32 %v578, %v484
        %v581 = vadd.f32 %v575, %v580
        %v582 = vmul.f32 %v581, %v491
        %v583 = vadd.f32 %v582, %v498
        %v584 = vmax.f32 %v572, %v583
        %v585 = vmax.f32 %v584, 0.0
        %v586 = vlaneseq
        %v587 = vshrl.u32 %v586, 7
        %vm588 = vcmp.eq.s32.totalorder %v587, 0
        %v589 = vsel %vm588, 0.0, %v513
        %vm590 = vcmp.eq.s32.totalorder %v587, 3
        %v591 = vsel %vm590, 0.0, %v585
        %593 = vrot.lane.b32.xlu0 %v537, 64
        %v594 = vpop.permute.xlu0 %593
        %597 = vrot.lane.b32.xlu0 %v591, 64
        %v598 = vpop.permute.xlu0 %597
        %vm600 = vcmask 523264
        %v601 = vsel %vm600, %v589, %v594
        %v602 = vsel %vm600, %v561, %v598
        %v603 = vpack.c.bf16 %v601, %v601
        %v604 = vpack.c.bf16 %v602, %v602
        %v605 = vld [vmem:[#allocation2] sm:$0xff]
        %v606 = vld [vmem:[#allocation2 + $0x8] sm:$0xff]
        %v607 = vld [vmem:[#allocation2 + $0x10] sm:$0xff]
        %v608 = vld [vmem:[#allocation2 + $0x18] sm:$0xff]
        %v609 = vld [vmem:[#allocation2 + $0x20] sm:$0xff]
        %v610 = vld [vmem:[#allocation2 + $0x28] sm:$0xff]
        %v611 = vld [vmem:[#allocation2 + $0x30] sm:$0xff]
        %v612 = vld [vmem:[#allocation2 + $0x38] sm:$0xff]
        %v613 = vld [vmem:[#allocation2 + $0x40] sm:$0xff]
        %v614 = vld [vmem:[#allocation2 + $0x48] sm:$0xff]
        %v615 = vld [vmem:[#allocation2 + $0x50] sm:$0xff]
        %v616 = vld [vmem:[#allocation2 + $0x58] sm:$0xff]
        %v617 = vld [vmem:[#allocation2 + $0x60] sm:$0xff]
        %v618 = vld [vmem:[#allocation2 + $0x68] sm:$0xff]
        %v619 = vld [vmem:[#allocation2 + $0x70] sm:$0xff]
        %v620 = vld [vmem:[#allocation2 + $0x78] sm:$0xff]
        %v621 = vld [vmem:[#allocation2 + $0x80] sm:$0xff]
        %v622 = vld [vmem:[#allocation2 + $0x88] sm:$0xff]
        %v623 = vld [vmem:[#allocation2 + $0x90] sm:$0xff]
        %v624 = vld [vmem:[#allocation2 + $0x98] sm:$0xff]
        %v625 = vld [vmem:[#allocation2 + $0xa0] sm:$0xff]
        %v626 = vld [vmem:[#allocation2 + $0xa8] sm:$0xff]
        %v627 = vld [vmem:[#allocation2 + $0xb0] sm:$0xff]
        %v628 = vld [vmem:[#allocation2 + $0xb8] sm:$0xff]
        %v629 = vld [vmem:[#allocation2 + $0xc0] sm:$0xff]
        %v630 = vld [vmem:[#allocation2 + $0xc8] sm:$0xff]
        %v631 = vld [vmem:[#allocation2 + $0xd0] sm:$0xff]
        %v632 = vld [vmem:[#allocation2 + $0xd8] sm:$0xff]
        %v633 = vld [vmem:[#allocation2 + $0xe0] sm:$0xff]
        %v634 = vld [vmem:[#allocation2 + $0xe8] sm:$0xff]
        %v635 = vld [vmem:[#allocation2 + $0xf0] sm:$0xff]
        %v636 = vld [vmem:[#allocation2 + $0xf8] sm:$0xff]
        %v669 = vunpack.c.l.b16 %v605
        %v670 = vunpack.c.h.b16 %v605
        %v671 = vunpack.c.l.b16 %v606
        %v672 = vunpack.c.h.b16 %v606
        %v673 = vunpack.c.l.b16 %v607
        %v674 = vunpack.c.h.b16 %v607
        %v675 = vunpack.c.l.b16 %v608
        %v676 = vunpack.c.h.b16 %v608
        %v677 = vunpack.c.l.b16 %v609
        %v678 = vunpack.c.h.b16 %v609
        %v679 = vunpack.c.l.b16 %v610
        %v680 = vunpack.c.h.b16 %v610
        %v681 = vunpack.c.l.b16 %v611
        %v682 = vunpack.c.h.b16 %v611
        %v683 = vunpack.c.l.b16 %v612
        %v684 = vunpack.c.h.b16 %v612
        %v685 = vunpack.c.l.b16 %v613
        %v686 = vunpack.c.h.b16 %v613
        %v687 = vunpack.c.l.b16 %v614
        %v688 = vunpack.c.h.b16 %v614
        %v689 = vunpack.c.l.b16 %v615
        %v690 = vunpack.c.h.b16 %v615
        %v691 = vunpack.c.l.b16 %v616
        %v692 = vunpack.c.h.b16 %v616
        %v693 = vunpack.c.l.b16 %v617
        %v694 = vunpack.c.h.b16 %v617
        %v695 = vunpack.c.l.b16 %v618
        %v696 = vunpack.c.h.b16 %v618
        %v697 = vunpack.c.l.b16 %v619
        %v698 = vunpack.c.h.b16 %v619
        %v699 = vunpack.c.l.b16 %v620
        %v700 = vunpack.c.h.b16 %v620
        %v701 = vunpack.c.l.b16 %v621
        %v702 = vunpack.c.h.b16 %v621
        %v703 = vunpack.c.l.b16 %v622
        %v704 = vunpack.c.h.b16 %v622
        %v705 = vunpack.c.l.b16 %v623
        %v706 = vunpack.c.h.b16 %v623
        %v707 = vunpack.c.l.b16 %v624
        %v708 = vunpack.c.h.b16 %v624
        %v709 = vunpack.c.l.b16 %v625
        %v710 = vunpack.c.h.b16 %v625
        %v711 = vunpack.c.l.b16 %v626
        %v712 = vunpack.c.h.b16 %v626
        %v713 = vunpack.c.l.b16 %v627
        %v714 = vunpack.c.h.b16 %v627
        %v715 = vunpack.c.l.b16 %v628
        %v716 = vunpack.c.h.b16 %v628
        %v717 = vunpack.c.l.b16 %v629
        %v718 = vunpack.c.h.b16 %v629
        %v719 = vunpack.c.l.b16 %v630
        %v720 = vunpack.c.h.b16 %v630
        %v721 = vunpack.c.l.b16 %v631
        %v722 = vunpack.c.h.b16 %v631
        %v723 = vunpack.c.l.b16 %v632
        %v724 = vunpack.c.h.b16 %v632
        %v725 = vunpack.c.l.b16 %v633
        %v726 = vunpack.c.h.b16 %v633
        %v727 = vunpack.c.l.b16 %v634
        %v728 = vunpack.c.h.b16 %v634
        %v729 = vunpack.c.l.b16 %v635
        %v730 = vunpack.c.h.b16 %v635
        %v731 = vunpack.c.l.b16 %v636
        %v732 = vunpack.c.h.b16 %v636
        %v733 = vpack.c.b16 %v671, %v669
        %v734 = vpack.c.b16 %v672, %v670
        %v735 = vpack.c.b16 %v675, %v673
        %v736 = vpack.c.b16 %v676, %v674
        %v737 = vpack.c.b16 %v679, %v677
        %v738 = vpack.c.b16 %v680, %v678
        %v739 = vpack.c.b16 %v683, %v681
        %v740 = vpack.c.b16 %v684, %v682
        %v741 = vpack.c.b16 %v687, %v685
        %v742 = vpack.c.b16 %v688, %v686
        %v743 = vpack.c.b16 %v691, %v689
        %v744 = vpack.c.b16 %v692, %v690
        %v745 = vpack.c.b16 %v695, %v693
        %v746 = vpack.c.b16 %v696, %v694
        %v747 = vpack.c.b16 %v699, %v697
        %v748 = vpack.c.b16 %v700, %v698
        %v749 = vpack.c.b16 %v703, %v701
        %v750 = vpack.c.b16 %v704, %v702
        %v751 = vpack.c.b16 %v707, %v705
        %v752 = vpack.c.b16 %v708, %v706
        %v753 = vpack.c.b16 %v711, %v709
        %v754 = vpack.c.b16 %v712, %v710
        %v755 = vpack.c.b16 %v715, %v713
        %v756 = vpack.c.b16 %v716, %v714
        %v757 = vpack.c.b16 %v719, %v717
        %v758 = vpack.c.b16 %v720, %v718
        %v759 = vpack.c.b16 %v723, %v721
        %v760 = vpack.c.b16 %v724, %v722
        %v761 = vpack.c.b16 %v727, %v725
        %v762 = vpack.c.b16 %v728, %v726
        %v763 = vpack.c.b16 %v731, %v729
        %v764 = vpack.c.b16 %v732, %v730
        %797 = vmatprep.subr.bf16.mxu0 %v734
        %798 = vmatpush1.bf16.msra.mxu0 %v733
        %799 = vmatprep.subr.bf16.mxu0 %v736
        %800 = vmatpush1.bf16.msra.mxu0 %v735
        %801 = vmatprep.subr.bf16.mxu0 %v738
        %802 = vmatpush1.bf16.msra.mxu0 %v737
        %803 = vmatprep.subr.bf16.mxu0 %v740
        %804 = vmatpush1.bf16.msra.mxu0 %v739
        %805 = vmatprep.subr.bf16.mxu0 %v742
        %806 = vmatpush1.bf16.msra.mxu0 %v741
        %807 = vmatprep.subr.bf16.mxu0 %v744
        %808 = vmatpush1.bf16.msra.mxu0 %v743
        %809 = vmatprep.subr.bf16.mxu0 %v746
        %810 = vmatpush1.bf16.msra.mxu0 %v745
        %811 = vmatprep.subr.bf16.mxu0 %v748
        %812 = vmatpush1.bf16.msra.mxu0 %v747
        %813 = vmatprep.subr.bf16.mxu0 %v750
        %814 = vmatpush1.bf16.msra.mxu0 %v749
        %815 = vmatprep.subr.bf16.mxu0 %v752
        %816 = vmatpush1.bf16.msra.mxu0 %v751
        %817 = vmatprep.subr.bf16.mxu0 %v754
        %818 = vmatpush1.bf16.msra.mxu0 %v753
        %819 = vmatprep.subr.bf16.mxu0 %v756
        %820 = vmatpush1.bf16.msra.mxu0 %v755
        %821 = vmatprep.subr.bf16.mxu0 %v758
        %822 = vmatpush1.bf16.msra.mxu0 %v757
        %823 = vmatprep.subr.bf16.mxu0 %v760
        %824 = vmatpush1.bf16.msra.mxu0 %v759
        %825 = vmatprep.subr.bf16.mxu0 %v762
        %826 = vmatpush1.bf16.msra.mxu0 %v761
        %827 = vmatprep.subr.bf16.mxu0 %v764
        %828 = vmatpush1.bf16.msra.mxu0 %v763
        %829 = vmatprep.mubr.bf16.mxu0 %v604
        %830 = vmatmul.mubr.bf16.gmra.mrb[0].mxu0 %v603
        %v831 = vpop.f32.mrb[0].mxu0
        %v832 = vadd.f32 0.0, %v831
        %v833 = vpop.f32.mrb[0].mxu0
        %v834 = vadd.f32 0.0, %v833
        %v835 = vpop.f32.mrb[0].mxu0
        %v836 = vpop.f32.mrb[0].mxu0
        %837 = vdwg.mxu0
        %v838 = vld [vmem:[%s5] sm:$0x3]
        %v840 = vlaneseq
        %v841 = vshrl.u32 %v840, 7
        %v842 = vsub.s32 0, %v841
        %v843 = vrot.slane %v838, %v842
        %v844 = vlaneseq
        %v845 = vshrl.u32 %v844, 7
        %v846 = vsub.s32 1, %v845
        %v847 = vrot.slane %v838, %v846
        %v850 = vmul.f32 %v832, %v843
        %v851 = vmul.f32 %v834, %v847
        %v852 = vld [vmem:[%s6] sm:$0x3]
        %v854 = vlaneseq
        %v855 = vshrl.u32 %v854, 7
        %v856 = vsub.s32 0, %v855
        %v857 = vrot.slane %v852, %v856
        %v858 = vlaneseq
        %v859 = vshrl.u32 %v858, 7
        %v860 = vsub.s32 1, %v859
        %v861 = vrot.slane %v852, %v860
        %v864 = vadd.f32 %v850, %v857
        %v865 = vadd.f32 %v851, %v861
        %v866 = vmax.f32 %v864, %v865
        %v867 = vmax.f32 %v866, 0.0
        %v869 = vrot.slane %v867, 1
        %v871 = vrot.slane %v867, 2
        %v873 = vrot.slane %v867, 3
        %v875 = vpack.c.bf16 %v867, %v867
        %v876 = vpack.c.bf16 %v869, %v869
        %v877 = vpack.c.bf16 %v871, %v871
        %v878 = vpack.c.bf16 %v873, %v873
        %v879 = vld [vmem:[#allocation5] sm:$0xff]
        %v880 = vld [vmem:[#allocation5 + $0x8] sm:$0xff]
        %v881 = vld [vmem:[#allocation5 + $0x10] sm:$0xff]
        %v882 = vld [vmem:[#allocation5 + $0x18] sm:$0xff]
        %v883 = vld [vmem:[#allocation5 + $0x20] sm:$0xff]
        %v884 = vld [vmem:[#allocation5 + $0x28] sm:$0xff]
        %v885 = vld [vmem:[#allocation5 + $0x30] sm:$0xff]
        %v886 = vld [vmem:[#allocation5 + $0x38] sm:$0xff]
        %v887 = vld [vmem:[#allocation5 + $0x40] sm:$0xff]
        %v888 = vld [vmem:[#allocation5 + $0x48] sm:$0xff]
        %v889 = vld [vmem:[#allocation5 + $0x50] sm:$0xff]
        %v890 = vld [vmem:[#allocation5 + $0x58] sm:$0xff]
        %v891 = vld [vmem:[#allocation5 + $0x60] sm:$0xff]
        %v892 = vld [vmem:[#allocation5 + $0x68] sm:$0xff]
        %v893 = vld [vmem:[#allocation5 + $0x70] sm:$0xff]
        %v894 = vld [vmem:[#allocation5 + $0x78] sm:$0xff]
        %v895 = vld [vmem:[#allocation5 + $0x80] sm:$0xff]
        %v896 = vld [vmem:[#allocation5 + $0x88] sm:$0xff]
        %v897 = vld [vmem:[#allocation5 + $0x90] sm:$0xff]
        %v898 = vld [vmem:[#allocation5 + $0x98] sm:$0xff]
        %v899 = vld [vmem:[#allocation5 + $0xa0] sm:$0xff]
        %v900 = vld [vmem:[#allocation5 + $0xa8] sm:$0xff]
        %v901 = vld [vmem:[#allocation5 + $0xb0] sm:$0xff]
        %v902 = vld [vmem:[#allocation5 + $0xb8] sm:$0xff]
        %v903 = vld [vmem:[#allocation5 + $0xc0] sm:$0xff]
        %v904 = vld [vmem:[#allocation5 + $0xc8] sm:$0xff]
        %v905 = vld [vmem:[#allocation5 + $0xd0] sm:$0xff]
        %v906 = vld [vmem:[#allocation5 + $0xd8] sm:$0xff]
        %v907 = vld [vmem:[#allocation5 + $0xe0] sm:$0xff]
        %v908 = vld [vmem:[#allocation5 + $0xe8] sm:$0xff]
        %v909 = vld [vmem:[#allocation5 + $0xf0] sm:$0xff]
        %v910 = vld [vmem:[#allocation5 + $0xf8] sm:$0xff]
        %v911 = vld [vmem:[#allocation5 + $0x100] sm:$0xff]
        %v912 = vld [vmem:[#allocation5 + $0x108] sm:$0xff]
        %v913 = vld [vmem:[#allocation5 + $0x110] sm:$0xff]
        %v914 = vld [vmem:[#allocation5 + $0x118] sm:$0xff]
        %v915 = vld [vmem:[#allocation5 + $0x120] sm:$0xff]
        %v916 = vld [vmem:[#allocation5 + $0x128] sm:$0xff]
        %v917 = vld [vmem:[#allocation5 + $0x130] sm:$0xff]
        %v918 = vld [vmem:[#allocation5 + $0x138] sm:$0xff]
        %v919 = vld [vmem:[#allocation5 + $0x140] sm:$0xff]
        %v920 = vld [vmem:[#allocation5 + $0x148] sm:$0xff]
        %v921 = vld [vmem:[#allocation5 + $0x150] sm:$0xff]
        %v922 = vld [vmem:[#allocation5 + $0x158] sm:$0xff]
        %v923 = vld [vmem:[#allocation5 + $0x160] sm:$0xff]
        %v924 = vld [vmem:[#allocation5 + $0x168] sm:$0xff]
        %v925 = vld [vmem:[#allocation5 + $0x170] sm:$0xff]
        %v926 = vld [vmem:[#allocation5 + $0x178] sm:$0xff]
        %v927 = vld [vmem:[#allocation5 + $0x180] sm:$0xff]
        %v928 = vld [vmem:[#allocation5 + $0x188] sm:$0xff]
        %v929 = vld [vmem:[#allocation5 + $0x190] sm:$0xff]
        %v930 = vld [vmem:[#allocation5 + $0x198] sm:$0xff]
        %v931 = vld [vmem:[#allocation5 + $0x1a0] sm:$0xff]
        %v932 = vld [vmem:[#allocation5 + $0x1a8] sm:$0xff]
        %v933 = vld [vmem:[#allocation5 + $0x1b0] sm:$0xff]
        %v934 = vld [vmem:[#allocation5 + $0x1b8] sm:$0xff]
        %v935 = vld [vmem:[#allocation5 + $0x1c0] sm:$0xff]
        %v936 = vld [vmem:[#allocation5 + $0x1c8] sm:$0xff]
        %v937 = vld [vmem:[#allocation5 + $0x1d0] sm:$0xff]
        %v938 = vld [vmem:[#allocation5 + $0x1d8] sm:$0xff]
        %v939 = vld [vmem:[#allocation5 + $0x1e0] sm:$0xff]
        %v940 = vld [vmem:[#allocation5 + $0x1e8] sm:$0xff]
        %v941 = vld [vmem:[#allocation5 + $0x1f0] sm:$0xff]
        %v942 = vld [vmem:[#allocation5 + $0x1f8] sm:$0xff]
        %v943 = vld [vmem:[#allocation5 + $0x200] sm:$0xff]
        %v944 = vld [vmem:[#allocation5 + $0x208] sm:$0xff]
        %v945 = vld [vmem:[#allocation5 + $0x210] sm:$0xff]
        %v946 = vld [vmem:[#allocation5 + $0x218] sm:$0xff]
        %v947 = vld [vmem:[#allocation5 + $0x220] sm:$0xff]
        %v948 = vld [vmem:[#allocation5 + $0x228] sm:$0xff]
        %v949 = vld [vmem:[#allocation5 + $0x230] sm:$0xff]
        %v950 = vld [vmem:[#allocation5 + $0x238] sm:$0xff]
        %v951 = vld [vmem:[#allocation5 + $0x240] sm:$0xff]
        %v952 = vld [vmem:[#allocation5 + $0x248] sm:$0xff]
        %v953 = vld [vmem:[#allocation5 + $0x250] sm:$0xff]
        %v954 = vld [vmem:[#allocation5 + $0x258] sm:$0xff]
        %v955 = vld [vmem:[#allocation5 + $0x260] sm:$0xff]
        %v956 = vld [vmem:[#allocation5 + $0x268] sm:$0xff]
        %v957 = vld [vmem:[#allocation5 + $0x270] sm:$0xff]
        %v958 = vld [vmem:[#allocation5 + $0x278] sm:$0xff]
        %v959 = vld [vmem:[#allocation5 + $0x280] sm:$0xff]
        %v960 = vld [vmem:[#allocation5 + $0x288] sm:$0xff]
        %v961 = vld [vmem:[#allocation5 + $0x290] sm:$0xff]
        %v962 = vld [vmem:[#allocation5 + $0x298] sm:$0xff]
        %v963 = vld [vmem:[#allocation5 + $0x2a0] sm:$0xff]
        %v964 = vld [vmem:[#allocation5 + $0x2a8] sm:$0xff]
        %v965 = vld [vmem:[#allocation5 + $0x2b0] sm:$0xff]
        %v966 = vld [vmem:[#allocation5 + $0x2b8] sm:$0xff]
        %v967 = vld [vmem:[#allocation5 + $0x2c0] sm:$0xff]
        %v968 = vld [vmem:[#allocation5 + $0x2c8] sm:$0xff]
        %v969 = vld [vmem:[#allocation5 + $0x2d0] sm:$0xff]
        %v970 = vld [vmem:[#allocation5 + $0x2d8] sm:$0xff]
        %v971 = vld [vmem:[#allocation5 + $0x2e0] sm:$0xff]
        %v972 = vld [vmem:[#allocation5 + $0x2e8] sm:$0xff]
        %v973 = vld [vmem:[#allocation5 + $0x2f0] sm:$0xff]
        %v974 = vld [vmem:[#allocation5 + $0x2f8] sm:$0xff]
        %v975 = vld [vmem:[#allocation5 + $0x300] sm:$0xff]
        %v976 = vld [vmem:[#allocation5 + $0x308] sm:$0xff]
        %v977 = vld [vmem:[#allocation5 + $0x310] sm:$0xff]
        %v978 = vld [vmem:[#allocation5 + $0x318] sm:$0xff]
        %v979 = vld [vmem:[#allocation5 + $0x320] sm:$0xff]
        %v980 = vld [vmem:[#allocation5 + $0x328] sm:$0xff]
        %v981 = vld [vmem:[#allocation5 + $0x330] sm:$0xff]
        %v982 = vld [vmem:[#allocation5 + $0x338] sm:$0xff]
        %v983 = vld [vmem:[#allocation5 + $0x340] sm:$0xff]
        %v984 = vld [vmem:[#allocation5 + $0x348] sm:$0xff]
        %v985 = vld [vmem:[#allocation5 + $0x350] sm:$0xff]
        %v986 = vld [vmem:[#allocation5 + $0x358] sm:$0xff]
        %v987 = vld [vmem:[#allocation5 + $0x360] sm:$0xff]
        %v988 = vld [vmem:[#allocation5 + $0x368] sm:$0xff]
        %v989 = vld [vmem:[#allocation5 + $0x370] sm:$0xff]
        %v990 = vld [vmem:[#allocation5 + $0x378] sm:$0xff]
        %v991 = vld [vmem:[#allocation5 + $0x380] sm:$0xff]
        %v992 = vld [vmem:[#allocation5 + $0x388] sm:$0xff]
        %v993 = vld [vmem:[#allocation5 + $0x390] sm:$0xff]
        %v994 = vld [vmem:[#allocation5 + $0x398] sm:$0xff]
        %v995 = vld [vmem:[#allocation5 + $0x3a0] sm:$0xff]
        %v996 = vld [vmem:[#allocation5 + $0x3a8] sm:$0xff]
        %v997 = vld [vmem:[#allocation5 + $0x3b0] sm:$0xff]
        %v998 = vld [vmem:[#allocation5 + $0x3b8] sm:$0xff]
        %v999 = vld [vmem:[#allocation5 + $0x3c0] sm:$0xff]
        %v1000 = vld [vmem:[#allocation5 + $0x3c8] sm:$0xff]
        %v1001 = vld [vmem:[#allocation5 + $0x3d0] sm:$0xff]
        %v1002 = vld [vmem:[#allocation5 + $0x3d8] sm:$0xff]
        %v1003 = vld [vmem:[#allocation5 + $0x3e0] sm:$0xff]
        %v1004 = vld [vmem:[#allocation5 + $0x3e8] sm:$0xff]
        %v1005 = vld [vmem:[#allocation5 + $0x3f0] sm:$0xff]
        %v1006 = vld [vmem:[#allocation5 + $0x3f8] sm:$0xff]
        %v1135 = vunpack.c.l.b16 %v879
        %v1136 = vunpack.c.h.b16 %v879
        %v1137 = vunpack.c.l.b16 %v880
        %v1138 = vunpack.c.h.b16 %v880
        %v1139 = vunpack.c.l.b16 %v881
        %v1140 = vunpack.c.h.b16 %v881
        %v1141 = vunpack.c.l.b16 %v882
        %v1142 = vunpack.c.h.b16 %v882
        %v1143 = vunpack.c.l.b16 %v883
        %v1144 = vunpack.c.h.b16 %v883
        %v1145 = vunpack.c.l.b16 %v884
        %v1146 = vunpack.c.h.b16 %v884
        %v1147 = vunpack.c.l.b16 %v885
        %v1148 = vunpack.c.h.b16 %v885
        %v1149 = vunpack.c.l.b16 %v886
        %v1150 = vunpack.c.h.b16 %v886
        %v1151 = vunpack.c.l.b16 %v887
        %v1152 = vunpack.c.h.b16 %v887
        %v1153 = vunpack.c.l.b16 %v888
        %v1154 = vunpack.c.h.b16 %v888
        %v1155 = vunpack.c.l.b16 %v889
        %v1156 = vunpack.c.h.b16 %v889
        %v1157 = vunpack.c.l.b16 %v890
        %v1158 = vunpack.c.h.b16 %v890
        %v1159 = vunpack.c.l.b16 %v891
        %v1160 = vunpack.c.h.b16 %v891
        %v1161 = vunpack.c.l.b16 %v892
        %v1162 = vunpack.c.h.b16 %v892
        %v1163 = vunpack.c.l.b16 %v893
        %v1164 = vunpack.c.h.b16 %v893
        %v1165 = vunpack.c.l.b16 %v894
        %v1166 = vunpack.c.h.b16 %v894
        %v1167 = vunpack.c.l.b16 %v895
        %v1168 = vunpack.c.h.b16 %v895
        %v1169 = vunpack.c.l.b16 %v896
        %v1170 = vunpack.c.h.b16 %v896
        %v1171 = vunpack.c.l.b16 %v897
        %v1172 = vunpack.c.h.b16 %v897
        %v1173 = vunpack.c.l.b16 %v898
        %v1174 = vunpack.c.h.b16 %v898
        %v1175 = vunpack.c.l.b16 %v899
        %v1176 = vunpack.c.h.b16 %v899
        %v1177 = vunpack.c.l.b16 %v900
        %v1178 = vunpack.c.h.b16 %v900
        %v1179 = vunpack.c.l.b16 %v901
        %v1180 = vunpack.c.h.b16 %v901
        %v1181 = vunpack.c.l.b16 %v902
        %v1182 = vunpack.c.h.b16 %v902
        %v1183 = vunpack.c.l.b16 %v903
        %v1184 = vunpack.c.h.b16 %v903
        %v1185 = vunpack.c.l.b16 %v904
        %v1186 = vunpack.c.h.b16 %v904
        %v1187 = vunpack.c.l.b16 %v905
        %v1188 = vunpack.c.h.b16 %v905
        %v1189 = vunpack.c.l.b16 %v906
        %v1190 = vunpack.c.h.b16 %v906
        %v1191 = vunpack.c.l.b16 %v907
        %v1192 = vunpack.c.h.b16 %v907
        %v1193 = vunpack.c.l.b16 %v908
        %v1194 = vunpack.c.h.b16 %v908
        %v1195 = vunpack.c.l.b16 %v909
        %v1196 = vunpack.c.h.b16 %v909
        %v1197 = vunpack.c.l.b16 %v910
        %v1198 = vunpack.c.h.b16 %v910
        %v1199 = vunpack.c.l.b16 %v911
        %v1200 = vunpack.c.h.b16 %v911
        %v1201 = vunpack.c.l.b16 %v912
        %v1202 = vunpack.c.h.b16 %v912
        %v1203 = vunpack.c.l.b16 %v913
        %v1204 = vunpack.c.h.b16 %v913
        %v1205 = vunpack.c.l.b16 %v914
        %v1206 = vunpack.c.h.b16 %v914
        %v1207 = vunpack.c.l.b16 %v915
        %v1208 = vunpack.c.h.b16 %v915
        %v1209 = vunpack.c.l.b16 %v916
        %v1210 = vunpack.c.h.b16 %v916
        %v1211 = vunpack.c.l.b16 %v917
        %v1212 = vunpack.c.h.b16 %v917
        %v1213 = vunpack.c.l.b16 %v918
        %v1214 = vunpack.c.h.b16 %v918
        %v1215 = vunpack.c.l.b16 %v919
        %v1216 = vunpack.c.h.b16 %v919
        %v1217 = vunpack.c.l.b16 %v920
        %v1218 = vunpack.c.h.b16 %v920
        %v1219 = vunpack.c.l.b16 %v921
        %v1220 = vunpack.c.h.b16 %v921
        %v1221 = vunpack.c.l.b16 %v922
        %v1222 = vunpack.c.h.b16 %v922
        %v1223 = vunpack.c.l.b16 %v923
        %v1224 = vunpack.c.h.b16 %v923
        %v1225 = vunpack.c.l.b16 %v924
        %v1226 = vunpack.c.h.b16 %v924
        %v1227 = vunpack.c.l.b16 %v925
        %v1228 = vunpack.c.h.b16 %v925
        %v1229 = vunpack.c.l.b16 %v926
        %v1230 = vunpack.c.h.b16 %v926
        %v1231 = vunpack.c.l.b16 %v927
        %v1232 = vunpack.c.h.b16 %v927
        %v1233 = vunpack.c.l.b16 %v928
        %v1234 = vunpack.c.h.b16 %v928
        %v1235 = vunpack.c.l.b16 %v929
        %v1236 = vunpack.c.h.b16 %v929
        %v1237 = vunpack.c.l.b16 %v930
        %v1238 = vunpack.c.h.b16 %v930
        %v1239 = vunpack.c.l.b16 %v931
        %v1240 = vunpack.c.h.b16 %v931
        %v1241 = vunpack.c.l.b16 %v932
        %v1242 = vunpack.c.h.b16 %v932
        %v1243 = vunpack.c.l.b16 %v933
        %v1244 = vunpack.c.h.b16 %v933
        %v1245 = vunpack.c.l.b16 %v934
        %v1246 = vunpack.c.h.b16 %v934
        %v1247 = vunpack.c.l.b16 %v935
        %v1248 = vunpack.c.h.b16 %v935
        %v1249 = vunpack.c.l.b16 %v936
        %v1250 = vunpack.c.h.b16 %v936
        %v1251 = vunpack.c.l.b16 %v937
        %v1252 = vunpack.c.h.b16 %v937
        %v1253 = vunpack.c.l.b16 %v938
        %v1254 = vunpack.c.h.b16 %v938
        %v1255 = vunpack.c.l.b16 %v939
        %v1256 = vunpack.c.h.b16 %v939
        %v1257 = vunpack.c.l.b16 %v940
        %v1258 = vunpack.c.h.b16 %v940
        %v1259 = vunpack.c.l.b16 %v941
        %v1260 = vunpack.c.h.b16 %v941
        %v1261 = vunpack.c.l.b16 %v942
        %v1262 = vunpack.c.h.b16 %v942
        %v1263 = vunpack.c.l.b16 %v943
        %v1264 = vunpack.c.h.b16 %v943
        %v1265 = vunpack.c.l.b16 %v944
        %v1266 = vunpack.c.h.b16 %v944
        %v1267 = vunpack.c.l.b16 %v945
        %v1268 = vunpack.c.h.b16 %v945
        %v1269 = vunpack.c.l.b16 %v946
        %v1270 = vunpack.c.h.b16 %v946
        %v1271 = vunpack.c.l.b16 %v947
        %v1272 = vunpack.c.h.b16 %v947
        %v1273 = vunpack.c.l.b16 %v948
        %v1274 = vunpack.c.h.b16 %v948
        %v1275 = vunpack.c.l.b16 %v949
        %v1276 = vunpack.c.h.b16 %v949
        %v1277 = vunpack.c.l.b16 %v950
        %v1278 = vunpack.c.h.b16 %v950
        %v1279 = vunpack.c.l.b16 %v951
        %v1280 = vunpack.c.h.b16 %v951
        %v1281 = vunpack.c.l.b16 %v952
        %v1282 = vunpack.c.h.b16 %v952
        %v1283 = vunpack.c.l.b16 %v953
        %v1284 = vunpack.c.h.b16 %v953
        %v1285 = vunpack.c.l.b16 %v954
        %v1286 = vunpack.c.h.b16 %v954
        %v1287 = vunpack.c.l.b16 %v955
        %v1288 = vunpack.c.h.b16 %v955
        %v1289 = vunpack.c.l.b16 %v956
        %v1290 = vunpack.c.h.b16 %v956
        %v1291 = vunpack.c.l.b16 %v957
        %v1292 = vunpack.c.h.b16 %v957
        %v1293 = vunpack.c.l.b16 %v958
        %v1294 = vunpack.c.h.b16 %v958
        %v1295 = vunpack.c.l.b16 %v959
        %v1296 = vunpack.c.h.b16 %v959
        %v1297 = vunpack.c.l.b16 %v960
        %v1298 = vunpack.c.h.b16 %v960
        %v1299 = vunpack.c.l.b16 %v961
        %v1300 = vunpack.c.h.b16 %v961
        %v1301 = vunpack.c.l.b16 %v962
        %v1302 = vunpack.c.h.b16 %v962
        %v1303 = vunpack.c.l.b16 %v963
        %v1304 = vunpack.c.h.b16 %v963
        %v1305 = vunpack.c.l.b16 %v964
        %v1306 = vunpack.c.h.b16 %v964
        %v1307 = vunpack.c.l.b16 %v965
        %v1308 = vunpack.c.h.b16 %v965
        %v1309 = vunpack.c.l.b16 %v966
        %v1310 = vunpack.c.h.b16 %v966
        %v1311 = vunpack.c.l.b16 %v967
        %v1312 = vunpack.c.h.b16 %v967
        %v1313 = vunpack.c.l.b16 %v968
        %v1314 = vunpack.c.h.b16 %v968
        %v1315 = vunpack.c.l.b16 %v969
        %v1316 = vunpack.c.h.b16 %v969
        %v1317 = vunpack.c.l.b16 %v970
        %v1318 = vunpack.c.h.b16 %v970
        %v1319 = vunpack.c.l.b16 %v971
        %v1320 = vunpack.c.h.b16 %v971
        %v1321 = vunpack.c.l.b16 %v972
        %v1322 = vunpack.c.h.b16 %v972
        %v1323 = vunpack.c.l.b16 %v973
        %v1324 = vunpack.c.h.b16 %v973
        %v1325 = vunpack.c.l.b16 %v974
        %v1326 = vunpack.c.h.b16 %v974
        %v1327 = vunpack.c.l.b16 %v975
        %v1328 = vunpack.c.h.b16 %v975
        %v1329 = vunpack.c.l.b16 %v976
        %v1330 = vunpack.c.h.b16 %v976
        %v1331 = vunpack.c.l.b16 %v977
        %v1332 = vunpack.c.h.b16 %v977
        %v1333 = vunpack.c.l.b16 %v978
        %v1334 = vunpack.c.h.b16 %v978
        %v1335 = vunpack.c.l.b16 %v979
        %v1336 = vunpack.c.h.b16 %v979
        %v1337 = vunpack.c.l.b16 %v980
        %v1338 = vunpack.c.h.b16 %v980
        %v1339 = vunpack.c.l.b16 %v981
        %v1340 = vunpack.c.h.b16 %v981
        %v1341 = vunpack.c.l.b16 %v982
        %v1342 = vunpack.c.h.b16 %v982
        %v1343 = vunpack.c.l.b16 %v983
        %v1344 = vunpack.c.h.b16 %v983
        %v1345 = vunpack.c.l.b16 %v984
        %v1346 = vunpack.c.h.b16 %v984
        %v1347 = vunpack.c.l.b16 %v985
        %v1348 = vunpack.c.h.b16 %v985
        %v1349 = vunpack.c.l.b16 %v986
        %v1350 = vunpack.c.h.b16 %v986
        %v1351 = vunpack.c.l.b16 %v987
        %v1352 = vunpack.c.h.b16 %v987
        %v1353 = vunpack.c.l.b16 %v988
        %v1354 = vunpack.c.h.b16 %v988
        %v1355 = vunpack.c.l.b16 %v989
        %v1356 = vunpack.c.h.b16 %v989
        %v1357 = vunpack.c.l.b16 %v990
        %v1358 = vunpack.c.h.b16 %v990
        %v1359 = vunpack.c.l.b16 %v991
        %v1360 = vunpack.c.h.b16 %v991
        %v1361 = vunpack.c.l.b16 %v992
        %v1362 = vunpack.c.h.b16 %v992
        %v1363 = vunpack.c.l.b16 %v993
        %v1364 = vunpack.c.h.b16 %v993
        %v1365 = vunpack.c.l.b16 %v994
        %v1366 = vunpack.c.h.b16 %v994
        %v1367 = vunpack.c.l.b16 %v995
        %v1368 = vunpack.c.h.b16 %v995
        %v1369 = vunpack.c.l.b16 %v996
        %v1370 = vunpack.c.h.b16 %v996
        %v1371 = vunpack.c.l.b16 %v997
        %v1372 = vunpack.c.h.b16 %v997
        %v1373 = vunpack.c.l.b16 %v998
        %v1374 = vunpack.c.h.b16 %v998
        %v1375 = vunpack.c.l.b16 %v999
        %v1376 = vunpack.c.h.b16 %v999
        %v1377 = vunpack.c.l.b16 %v1000
        %v1378 = vunpack.c.h.b16 %v1000
        %v1379 = vunpack.c.l.b16 %v1001
        %v1380 = vunpack.c.h.b16 %v1001
        %v1381 = vunpack.c.l.b16 %v1002
        %v1382 = vunpack.c.h.b16 %v1002
        %v1383 = vunpack.c.l.b16 %v1003
        %v1384 = vunpack.c.h.b16 %v1003
        %v1385 = vunpack.c.l.b16 %v1004
        %v1386 = vunpack.c.h.b16 %v1004
        %v1387 = vunpack.c.l.b16 %v1005
        %v1388 = vunpack.c.h.b16 %v1005
        %v1389 = vunpack.c.l.b16 %v1006
        %v1390 = vunpack.c.h.b16 %v1006
        %v1391 = vpack.c.b16 %v1139, %v1135
        %v1392 = vpack.c.b16 %v1140, %v1136
        %v1393 = vpack.c.b16 %v1141, %v1137
        %v1394 = vpack.c.b16 %v1142, %v1138
        %v1395 = vpack.c.b16 %v1147, %v1143
        %v1396 = vpack.c.b16 %v1148, %v1144
        %v1397 = vpack.c.b16 %v1149, %v1145
        %v1398 = vpack.c.b16 %v1150, %v1146
        %v1399 = vpack.c.b16 %v1155, %v1151
        %v1400 = vpack.c.b16 %v1156, %v1152
        %v1401 = vpack.c.b16 %v1157, %v1153
        %v1402 = vpack.c.b16 %v1158, %v1154
        %v1403 = vpack.c.b16 %v1163, %v1159
        %v1404 = vpack.c.b16 %v1164, %v1160
        %v1405 = vpack.c.b16 %v1165, %v1161
        %v1406 = vpack.c.b16 %v1166, %v1162
        %v1407 = vpack.c.b16 %v1171, %v1167
        %v1408 = vpack.c.b16 %v1172, %v1168
        %v1409 = vpack.c.b16 %v1173, %v1169
        %v1410 = vpack.c.b16 %v1174, %v1170
        %v1411 = vpack.c.b16 %v1179, %v1175
        %v1412 = vpack.c.b16 %v1180, %v1176
        %v1413 = vpack.c.b16 %v1181, %v1177
        %v1414 = vpack.c.b16 %v1182, %v1178
        %v1415 = vpack.c.b16 %v1187, %v1183
        %v1416 = vpack.c.b16 %v1188, %v1184
        %v1417 = vpack.c.b16 %v1189, %v1185
        %v1418 = vpack.c.b16 %v1190, %v1186
        %v1419 = vpack.c.b16 %v1195, %v1191
        %v1420 = vpack.c.b16 %v1196, %v1192
        %v1421 = vpack.c.b16 %v1197, %v1193
        %v1422 = vpack.c.b16 %v1198, %v1194
        %v1423 = vpack.c.b16 %v1203, %v1199
        %v1424 = vpack.c.b16 %v1204, %v1200
        %v1425 = vpack.c.b16 %v1205, %v1201
        %v1426 = vpack.c.b16 %v1206, %v1202
        %v1427 = vpack.c.b16 %v1211, %v1207
        %v1428 = vpack.c.b16 %v1212, %v1208
        %v1429 = vpack.c.b16 %v1213, %v1209
        %v1430 = vpack.c.b16 %v1214, %v1210
        %v1431 = vpack.c.b16 %v1219, %v1215
        %v1432 = vpack.c.b16 %v1220, %v1216
        %v1433 = vpack.c.b16 %v1221, %v1217
        %v1434 = vpack.c.b16 %v1222, %v1218
        %v1435 = vpack.c.b16 %v1227, %v1223
        %v1436 = vpack.c.b16 %v1228, %v1224
        %v1437 = vpack.c.b16 %v1229, %v1225
        %v1438 = vpack.c.b16 %v1230, %v1226
        %v1439 = vpack.c.b16 %v1235, %v1231
        %v1440 = vpack.c.b16 %v1236, %v1232
        %v1441 = vpack.c.b16 %v1237, %v1233
        %v1442 = vpack.c.b16 %v1238, %v1234
        %v1443 = vpack.c.b16 %v1243, %v1239
        %v1444 = vpack.c.b16 %v1244, %v1240
        %v1445 = vpack.c.b16 %v1245, %v1241
        %v1446 = vpack.c.b16 %v1246, %v1242
        %v1447 = vpack.c.b16 %v1251, %v1247
        %v1448 = vpack.c.b16 %v1252, %v1248
        %v1449 = vpack.c.b16 %v1253, %v1249
        %v1450 = vpack.c.b16 %v1254, %v1250
        %v1451 = vpack.c.b16 %v1259, %v1255
        %v1452 = vpack.c.b16 %v1260, %v1256
        %v1453 = vpack.c.b16 %v1261, %v1257
        %v1454 = vpack.c.b16 %v1262, %v1258
        %v1455 = vpack.c.b16 %v1267, %v1263
        %v1456 = vpack.c.b16 %v1268, %v1264
        %v1457 = vpack.c.b16 %v1269, %v1265
        %v1458 = vpack.c.b16 %v1270, %v1266
        %v1459 = vpack.c.b16 %v1275, %v1271
        %v1460 = vpack.c.b16 %v1276, %v1272
        %v1461 = vpack.c.b16 %v1277, %v1273
        %v1462 = vpack.c.b16 %v1278, %v1274
        %v1463 = vpack.c.b16 %v1283, %v1279
        %v1464 = vpack.c.b16 %v1284, %v1280
        %v1465 = vpack.c.b16 %v1285, %v1281
        %v1466 = vpack.c.b16 %v1286, %v1282
        %v1467 = vpack.c.b16 %v1291, %v1287
        %v1468 = vpack.c.b16 %v1292, %v1288
        %v1469 = vpack.c.b16 %v1293, %v1289
        %v1470 = vpack.c.b16 %v1294, %v1290
        %v1471 = vpack.c.b16 %v1299, %v1295
        %v1472 = vpack.c.b16 %v1300, %v1296
        %v1473 = vpack.c.b16 %v1301, %v1297
        %v1474 = vpack.c.b16 %v1302, %v1298
        %v1475 = vpack.c.b16 %v1307, %v1303
        %v1476 = vpack.c.b16 %v1308, %v1304
        %v1477 = vpack.c.b16 %v1309, %v1305
        %v1478 = vpack.c.b16 %v1310, %v1306
        %v1479 = vpack.c.b16 %v1315, %v1311
        %v1480 = vpack.c.b16 %v1316, %v1312
        %v1481 = vpack.c.b16 %v1317, %v1313
        %v1482 = vpack.c.b16 %v1318, %v1314
        %v1483 = vpack.c.b16 %v1323, %v1319
        %v1484 = vpack.c.b16 %v1324, %v1320
        %v1485 = vpack.c.b16 %v1325, %v1321
        %v1486 = vpack.c.b16 %v1326, %v1322
        %v1487 = vpack.c.b16 %v1331, %v1327
        %v1488 = vpack.c.b16 %v1332, %v1328
        %v1489 = vpack.c.b16 %v1333, %v1329
        %v1490 = vpack.c.b16 %v1334, %v1330
        %v1491 = vpack.c.b16 %v1339, %v1335
        %v1492 = vpack.c.b16 %v1340, %v1336
        %v1493 = vpack.c.b16 %v1341, %v1337
        %v1494 = vpack.c.b16 %v1342, %v1338
        %v1495 = vpack.c.b16 %v1347, %v1343
        %v1496 = vpack.c.b16 %v1348, %v1344
        %v1497 = vpack.c.b16 %v1349, %v1345
        %v1498 = vpack.c.b16 %v1350, %v1346
        %v1499 = vpack.c.b16 %v1355, %v1351
        %v1500 = vpack.c.b16 %v1356, %v1352
        %v1501 = vpack.c.b16 %v1357, %v1353
        %v1502 = vpack.c.b16 %v1358, %v1354
        %v1503 = vpack.c.b16 %v1363, %v1359
        %v1504 = vpack.c.b16 %v1364, %v1360
        %v1505 = vpack.c.b16 %v1365, %v1361
        %v1506 = vpack.c.b16 %v1366, %v1362
        %v1507 = vpack.c.b16 %v1371, %v1367
        %v1508 = vpack.c.b16 %v1372, %v1368
        %v1509 = vpack.c.b16 %v1373, %v1369
        %v1510 = vpack.c.b16 %v1374, %v1370
        %v1511 = vpack.c.b16 %v1379, %v1375
        %v1512 = vpack.c.b16 %v1380, %v1376
        %v1513 = vpack.c.b16 %v1381, %v1377
        %v1514 = vpack.c.b16 %v1382, %v1378
        %v1515 = vpack.c.b16 %v1387, %v1383
        %v1516 = vpack.c.b16 %v1388, %v1384
        %v1517 = vpack.c.b16 %v1389, %v1385
        %v1518 = vpack.c.b16 %v1390, %v1386
        %1647 = vmatprep.subr.bf16.mxu0 %v1392
        %1648 = vmatpush1.bf16.msra.mxu0 %v1391
        %1649 = vmatprep.subr.bf16.mxu0 %v1396
        %1650 = vmatpush1.bf16.msra.mxu0 %v1395
        %1651 = vmatprep.subr.bf16.mxu0 %v1400
        %1652 = vmatpush1.bf16.msra.mxu0 %v1399
        %1653 = vmatprep.subr.bf16.mxu0 %v1404
        %1654 = vmatpush1.bf16.msra.mxu0 %v1403
        %1655 = vmatprep.subr.bf16.mxu0 %v1408
        %1656 = vmatpush1.bf16.msra.mxu0 %v1407
        %1657 = vmatprep.subr.bf16.mxu0 %v1412
        %1658 = vmatpush1.bf16.msra.mxu0 %v1411
        %1659 = vmatprep.subr.bf16.mxu0 %v1416
        %1660 = vmatpush1.bf16.msra.mxu0 %v1415
        %1661 = vmatprep.subr.bf16.mxu0 %v1420
        %1662 = vmatpush1.bf16.msra.mxu0 %v1419
        %1663 = vmatprep.subr.bf16.mxu0 %v1424
        %1664 = vmatpush1.bf16.msra.mxu0 %v1423
        %1665 = vmatprep.subr.bf16.mxu0 %v1428
        %1666 = vmatpush1.bf16.msra.mxu0 %v1427
        %1667 = vmatprep.subr.bf16.mxu0 %v1432
        %1668 = vmatpush1.bf16.msra.mxu0 %v1431
        %1669 = vmatprep.subr.bf16.mxu0 %v1436
        %1670 = vmatpush1.bf16.msra.mxu0 %v1435
        %1671 = vmatprep.subr.bf16.mxu0 %v1440
        %1672 = vmatpush1.bf16.msra.mxu0 %v1439
        %1673 = vmatprep.subr.bf16.mxu0 %v1444
        %1674 = vmatpush1.bf16.msra.mxu0 %v1443
        %1675 = vmatprep.subr.bf16.mxu0 %v1448
        %1676 = vmatpush1.bf16.msra.mxu0 %v1447
        %1677 = vmatprep.subr.bf16.mxu0 %v1452
        %1678 = vmatpush1.bf16.msra.mxu0 %v1451
        %1679 = vmatprep.mubr.bf16.mxu0 %v876
        %1680 = vmatmul.mubr.bf16.gmra.mrb[0].mxu0 %v875
        %v1681 = vpop.f32.mrb[0].mxu0
        %v1682 = vadd.f32 0.0, %v1681
        %v1683 = vpop.f32.mrb[0].mxu0
        %v1684 = vadd.f32 0.0, %v1683
        %v1685 = vpop.f32.mrb[0].mxu0
        %v1686 = vpop.f32.mrb[0].mxu0
        %1687 = vdwg.mxu0
        %1688 = vmatprep.subr.bf16.mxu0 %v1456
        %1689 = vmatpush1.bf16.msra.mxu0 %v1455
        %1690 = vmatprep.subr.bf16.mxu0 %v1460
        %1691 = vmatpush1.bf16.msra.mxu0 %v1459
        %1692 = vmatprep.subr.bf16.mxu0 %v1464
        %1693 = vmatpush1.bf16.msra.mxu0 %v1463
        %1694 = vmatprep.subr.bf16.mxu0 %v1468
        %1695 = vmatpush1.bf16.msra.mxu0 %v1467
        %1696 = vmatprep.subr.bf16.mxu0 %v1472
        %1697 = vmatpush1.bf16.msra.mxu0 %v1471
        %1698 = vmatprep.subr.bf16.mxu0 %v1476
        %1699 = vmatpush1.bf16.msra.mxu0 %v1475
        %1700 = vmatprep.subr.bf16.mxu0 %v1480
        %1701 = vmatpush1.bf16.msra.mxu0 %v1479
        %1702 = vmatprep.subr.bf16.mxu0 %v1484
        %1703 = vmatpush1.bf16.msra.mxu0 %v1483
        %1704 = vmatprep.subr.bf16.mxu0 %v1488
        %1705 = vmatpush1.bf16.msra.mxu0 %v1487
        %1706 = vmatprep.subr.bf16.mxu0 %v1492
        %1707 = vmatpush1.bf16.msra.mxu0 %v1491
        %1708 = vmatprep.subr.bf16.mxu0 %v1496
        %1709 = vmatpush1.bf16.msra.mxu0 %v1495
        %1710 = vmatprep.subr.bf16.mxu0 %v1500
        %1711 = vmatpush1.bf16.msra.mxu0 %v1499
        %1712 = vmatprep.subr.bf16.mxu0 %v1504
        %1713 = vmatpush1.bf16.msra.mxu0 %v1503
        %1714 = vmatprep.subr.bf16.mxu0 %v1508
        %1715 = vmatpush1.bf16.msra.mxu0 %v1507
        %1716 = vmatprep.subr.bf16.mxu0 %v1512
        %1717 = vmatpush1.bf16.msra.mxu0 %v1511
        %1718 = vmatprep.subr.bf16.mxu0 %v1516
        %1719 = vmatpush1.bf16.msra.mxu0 %v1515
        %1720 = vmatprep.mubr.bf16.mxu0 %v878
        %1721 = vmatmul.mubr.bf16.gmra.mrb[0].mxu0 %v877
        %v1722 = vpop.f32.mrb[0].mxu0
        %v1723 = vadd.f32 %v1682, %v1722
        %v1724 = vpop.f32.mrb[0].mxu0
        %v1725 = vadd.f32 %v1684, %v1724
        %v1726 = vpop.f32.mrb[0].mxu0
        %v1727 = vpop.f32.mrb[0].mxu0
        %1728 = vdwg.mxu0
        %1729 = vmatprep.subr.bf16.mxu0 %v1394
        %1730 = vmatpush1.bf16.msra.mxu0 %v1393
        %1731 = vmatprep.subr.bf16.mxu0 %v1398
        %1732 = vmatpush1.bf16.msra.mxu0 %v1397
        %1733 = vmatprep.subr.bf16.mxu0 %v1402
        %1734 = vmatpush1.bf16.msra.mxu0 %v1401
        %1735 = vmatprep.subr.bf16.mxu0 %v1406
        %1736 = vmatpush1.bf16.msra.mxu0 %v1405
        %1737 = vmatprep.subr.bf16.mxu0 %v1410
        %1738 = vmatpush1.bf16.msra.mxu0 %v1409
        %1739 = vmatprep.subr.bf16.mxu0 %v1414
        %1740 = vmatpush1.bf16.msra.mxu0 %v1413
        %1741 = vmatprep.subr.bf16.mxu0 %v1418
        %1742 = vmatpush1.bf16.msra.mxu0 %v1417
        %1743 = vmatprep.subr.bf16.mxu0 %v1422
        %1744 = vmatpush1.bf16.msra.mxu0 %v1421
        %1745 = vmatprep.subr.bf16.mxu0 %v1426
        %1746 = vmatpush1.bf16.msra.mxu0 %v1425
        %1747 = vmatprep.subr.bf16.mxu0 %v1430
        %1748 = vmatpush1.bf16.msra.mxu0 %v1429
        %1749 = vmatprep.subr.bf16.mxu0 %v1434
        %1750 = vmatpush1.bf16.msra.mxu0 %v1433
        %1751 = vmatprep.subr.bf16.mxu0 %v1438
        %1752 = vmatpush1.bf16.msra.mxu0 %v1437
        %1753 = vmatprep.subr.bf16.mxu0 %v1442
        %1754 = vmatpush1.bf16.msra.mxu0 %v1441
        %1755 = vmatprep.subr.bf16.mxu0 %v1446
        %1756 = vmatpush1.bf16.msra.mxu0 %v1445
        %1757 = vmatprep.subr.bf16.mxu0 %v1450
        %1758 = vmatpush1.bf16.msra.mxu0 %v1449
        %1759 = vmatprep.subr.bf16.mxu0 %v1454
        %1760 = vmatpush1.bf16.msra.mxu0 %v1453
        %1761 = vmatprep.mubr.bf16.mxu0 %v876
        %1762 = vmatmul.mubr.bf16.gmra.mrb[0].mxu0 %v875
        %v1763 = vpop.f32.mrb[0].mxu0
        %v1764 = vadd.f32 0.0, %v1763
        %v1765 = vpop.f32.mrb[0].mxu0
        %v1766 = vadd.f32 0.0, %v1765
        %v1767 = vpop.f32.mrb[0].mxu0
        %v1768 = vpop.f32.mrb[0].mxu0
        %1769 = vdwg.mxu0
        %1770 = vmatprep.subr.bf16.mxu0 %v1458
        %1771 = vmatpush1.bf16.msra.mxu0 %v1457
        %1772 = vmatprep.subr.bf16.mxu0 %v1462
        %1773 = vmatpush1.bf16.msra.mxu0 %v1461
        %1774 = vmatprep.subr.bf16.mxu0 %v1466
        %1775 = vmatpush1.bf16.msra.mxu0 %v1465
        %1776 = vmatprep.subr.bf16.mxu0 %v1470
        %1777 = vmatpush1.bf16.msra.mxu0 %v1469
        %1778 = vmatprep.subr.bf16.mxu0 %v1474
        %1779 = vmatpush1.bf16.msra.mxu0 %v1473
        %1780 = vmatprep.subr.bf16.mxu0 %v1478
        %1781 = vmatpush1.bf16.msra.mxu0 %v1477
        %1782 = vmatprep.subr.bf16.mxu0 %v1482
        %1783 = vmatpush1.bf16.msra.mxu0 %v1481
        %1784 = vmatprep.subr.bf16.mxu0 %v1486
        %1785 = vmatpush1.bf16.msra.mxu0 %v1485
        %1786 = vmatprep.subr.bf16.mxu0 %v1490
        %1787 = vmatpush1.bf16.msra.mxu0 %v1489
        %1788 = vmatprep.subr.bf16.mxu0 %v1494
        %1789 = vmatpush1.bf16.msra.mxu0 %v1493
        %1790 = vmatprep.subr.bf16.mxu0 %v1498
        %1791 = vmatpush1.bf16.msra.mxu0 %v1497
        %1792 = vmatprep.subr.bf16.mxu0 %v1502
        %1793 = vmatpush1.bf16.msra.mxu0 %v1501
        %1794 = vmatprep.subr.bf16.mxu0 %v1506
        %1795 = vmatpush1.bf16.msra.mxu0 %v1505
        %1796 = vmatprep.subr.bf16.mxu0 %v1510
        %1797 = vmatpush1.bf16.msra.mxu0 %v1509
        %1798 = vmatprep.subr.bf16.mxu0 %v1514
        %1799 = vmatpush1.bf16.msra.mxu0 %v1513
        %1800 = vmatprep.subr.bf16.mxu0 %v1518
        %1801 = vmatpush1.bf16.msra.mxu0 %v1517
        %1802 = vmatprep.mubr.bf16.mxu0 %v878
        %1803 = vmatmul.mubr.bf16.gmra.mrb[0].mxu0 %v877
        %v1804 = vpop.f32.mrb[0].mxu0
        %v1805 = vadd.f32 %v1764, %v1804
        %v1806 = vpop.f32.mrb[0].mxu0
        %v1807 = vadd.f32 %v1766, %v1806
        %v1808 = vpop.f32.mrb[0].mxu0
        %v1809 = vpop.f32.mrb[0].mxu0
        %1810 = vdwg.mxu0
        %v1811 = vld [vmem:[%s8] sm:$0xf]
        %v1813 = vlaneseq
        %v1814 = vshrl.u32 %v1813, 7
        %v1815 = vsub.s32 0, %v1814
        %v1816 = vrot.slane %v1811, %v1815
        %v1817 = vlaneseq
        %v1818 = vshrl.u32 %v1817, 7
        %v1819 = vsub.s32 1, %v1818
        %v1820 = vrot.slane %v1811, %v1819
        %v1821 = vlaneseq
        %v1822 = vshrl.u32 %v1821, 7
        %v1823 = vsub.s32 2, %v1822
        %v1824 = vrot.slane %v1811, %v1823
        %v1825 = vlaneseq
        %v1826 = vshrl.u32 %v1825, 7
        %v1827 = vsub.s32 3, %v1826
        %v1828 = vrot.slane %v1811, %v1827
        %v1833 = vmul.f32 %v1723, %v1816
        %v1834 = vmul.f32 %v1725, %v1820
        %v1835 = vmul.f32 %v1805, %v1824
        %v1836 = vmul.f32 %v1807, %v1828
        %v1837 = vld [vmem:[%s9] sm:$0xf]
        %v1839 = vlaneseq
        %v1840 = vshrl.u32 %v1839, 7
        %v1841 = vsub.s32 0, %v1840
        %v1842 = vrot.slane %v1837, %v1841
        %v1843 = vlaneseq
        %v1844 = vshrl.u32 %v1843, 7
        %v1845 = vsub.s32 1, %v1844
        %v1846 = vrot.slane %v1837, %v1845
        %v1847 = vlaneseq
        %v1848 = vshrl.u32 %v1847, 7
        %v1849 = vsub.s32 2, %v1848
        %v1850 = vrot.slane %v1837, %v1849
        %v1851 = vlaneseq
        %v1852 = vshrl.u32 %v1851, 7
        %v1853 = vsub.s32 3, %v1852
        %v1854 = vrot.slane %v1837, %v1853
        %v1859 = vadd.f32 %v1833, %v1842
        %v1860 = vadd.f32 %v1834, %v1846
        %v1861 = vadd.f32 %v1835, %v1850
        %v1862 = vadd.f32 %v1836, %v1854
        %v1863 = vmax.f32 %v1859, 0.0
        %v1864 = vmax.f32 %v1860, 0.0
        %v1865 = vmax.f32 %v1861, 0.0
        %v1866 = vmax.f32 %v1862, 0.0
        %v1867 = vpack.c.bf16 %v1863, %v1863
        %v1868 = vpack.c.bf16 %v1864, %v1864
        %v1869 = vpack.c.bf16 %v1865, %v1865
        %v1870 = vpack.c.bf16 %v1866, %v1866
        %v1871 = vld [vmem:[#allocation7] sm:$0xf]
        %v1872 = vld [vmem:[#allocation7 + $0x4] sm:$0xf]
        %v1873 = vld [vmem:[#allocation7 + $0x8] sm:$0xf]
        %v1874 = vld [vmem:[#allocation7 + $0xc] sm:$0xf]
        %v1875 = vld [vmem:[#allocation7 + $0x10] sm:$0xf]
        %v1876 = vld [vmem:[#allocation7 + $0x14] sm:$0xf]
        %v1877 = vld [vmem:[#allocation7 + $0x18] sm:$0xf]
        %v1878 = vld [vmem:[#allocation7 + $0x1c] sm:$0xf]
        %v1879 = vld [vmem:[#allocation7 + $0x20] sm:$0xf]
        %v1880 = vld [vmem:[#allocation7 + $0x24] sm:$0xf]
        %v1881 = vld [vmem:[#allocation7 + $0x28] sm:$0xf]
        %v1882 = vld [vmem:[#allocation7 + $0x2c] sm:$0xf]
        %v1883 = vld [vmem:[#allocation7 + $0x30] sm:$0xf]
        %v1884 = vld [vmem:[#allocation7 + $0x34] sm:$0xf]
        %v1885 = vld [vmem:[#allocation7 + $0x38] sm:$0xf]
        %v1886 = vld [vmem:[#allocation7 + $0x3c] sm:$0xf]
        %v1887 = vld [vmem:[#allocation7 + $0x40] sm:$0xf]
        %v1888 = vld [vmem:[#allocation7 + $0x44] sm:$0xf]
        %v1889 = vld [vmem:[#allocation7 + $0x48] sm:$0xf]
        %v1890 = vld [vmem:[#allocation7 + $0x4c] sm:$0xf]
        %v1891 = vld [vmem:[#allocation7 + $0x50] sm:$0xf]
        %v1892 = vld [vmem:[#allocation7 + $0x54] sm:$0xf]
        %v1893 = vld [vmem:[#allocation7 + $0x58] sm:$0xf]
        %v1894 = vld [vmem:[#allocation7 + $0x5c] sm:$0xf]
        %v1895 = vld [vmem:[#allocation7 + $0x60] sm:$0xf]
        %v1896 = vld [vmem:[#allocation7 + $0x64] sm:$0xf]
        %v1897 = vld [vmem:[#allocation7 + $0x68] sm:$0xf]
        %v1898 = vld [vmem:[#allocation7 + $0x6c] sm:$0xf]
        %v1899 = vld [vmem:[#allocation7 + $0x70] sm:$0xf]
        %v1900 = vld [vmem:[#allocation7 + $0x74] sm:$0xf]
        %v1901 = vld [vmem:[#allocation7 + $0x78] sm:$0xf]
        %v1902 = vld [vmem:[#allocation7 + $0x7c] sm:$0xf]
        %v1903 = vld [vmem:[#allocation7 + $0x80] sm:$0xf]
        %v1904 = vld [vmem:[#allocation7 + $0x84] sm:$0xf]
        %v1905 = vld [vmem:[#allocation7 + $0x88] sm:$0xf]
        %v1906 = vld [vmem:[#allocation7 + $0x8c] sm:$0xf]
        %v1907 = vld [vmem:[#allocation7 + $0x90] sm:$0xf]
        %v1908 = vld [vmem:[#allocation7 + $0x94] sm:$0xf]
        %v1909 = vld [vmem:[#allocation7 + $0x98] sm:$0xf]
        %v1910 = vld [vmem:[#allocation7 + $0x9c] sm:$0xf]
        %v1911 = vld [vmem:[#allocation7 + $0xa0] sm:$0xf]
        %v1912 = vld [vmem:[#allocation7 + $0xa4] sm:$0xf]
        %v1913 = vld [vmem:[#allocation7 + $0xa8] sm:$0xf]
        %v1914 = vld [vmem:[#allocation7 + $0xac] sm:$0xf]
        %v1915 = vld [vmem:[#allocation7 + $0xb0] sm:$0xf]
        %v1916 = vld [vmem:[#allocation7 + $0xb4] sm:$0xf]
        %v1917 = vld [vmem:[#allocation7 + $0xb8] sm:$0xf]
        %v1918 = vld [vmem:[#allocation7 + $0xbc] sm:$0xf]
        %v1919 = vld [vmem:[#allocation7 + $0xc0] sm:$0xf]
        %v1920 = vld [vmem:[#allocation7 + $0xc4] sm:$0xf]
        %v1921 = vld [vmem:[#allocation7 + $0xc8] sm:$0xf]
        %v1922 = vld [vmem:[#allocation7 + $0xcc] sm:$0xf]
        %v1923 = vld [vmem:[#allocation7 + $0xd0] sm:$0xf]
        %v1924 = vld [vmem:[#allocation7 + $0xd4] sm:$0xf]
        %v1925 = vld [vmem:[#allocation7 + $0xd8] sm:$0xf]
        %v1926 = vld [vmem:[#allocation7 + $0xdc] sm:$0xf]
        %v1927 = vld [vmem:[#allocation7 + $0xe0] sm:$0xf]
        %v1928 = vld [vmem:[#allocation7 + $0xe4] sm:$0xf]
        %v1929 = vld [vmem:[#allocation7 + $0xe8] sm:$0xf]
        %v1930 = vld [vmem:[#allocation7 + $0xec] sm:$0xf]
        %v1931 = vld [vmem:[#allocation7 + $0xf0] sm:$0xf]
        %v1932 = vld [vmem:[#allocation7 + $0xf4] sm:$0xf]
        %v1933 = vld [vmem:[#allocation7 + $0xf8] sm:$0xf]
        %v1934 = vld [vmem:[#allocation7 + $0xfc] sm:$0xf]
        %v1935 = vld [vmem:[%s11] sm:$0x1]
        %v2000 = vunpack.c.l.b16 %v1871
        %v2001 = vunpack.c.l.b16 %v1872
        %v2002 = vunpack.c.l.b16 %v1873
        %v2003 = vunpack.c.l.b16 %v1874
        %v2004 = vunpack.c.l.b16 %v1875
        %v2005 = vunpack.c.l.b16 %v1876
        %v2006 = vunpack.c.l.b16 %v1877
        %v2007 = vunpack.c.l.b16 %v1878
        %v2008 = vunpack.c.l.b16 %v1879
        %v2009 = vunpack.c.l.b16 %v1880
        %v2010 = vunpack.c.l.b16 %v1881
        %v2011 = vunpack.c.l.b16 %v1882
        %v2012 = vunpack.c.l.b16 %v1883
        %v2013 = vunpack.c.l.b16 %v1884
        %v2014 = vunpack.c.l.b16 %v1885
        %v2015 = vunpack.c.l.b16 %v1886
        %v2016 = vunpack.c.l.b16 %v1887
        %v2017 = vunpack.c.l.b16 %v1888
        %v2018 = vunpack.c.l.b16 %v1889
        %v2019 = vunpack.c.l.b16 %v1890
        %v2020 = vunpack.c.l.b16 %v1891
        %v2021 = vunpack.c.l.b16 %v1892
        %v2022 = vunpack.c.l.b16 %v1893
        %v2023 = vunpack.c.l.b16 %v1894
        %v2024 = vunpack.c.l.b16 %v1895
        %v2025 = vunpack.c.l.b16 %v1896
        %v2026 = vunpack.c.l.b16 %v1897
        %v2027 = vunpack.c.l.b16 %v1898
        %v2028 = vunpack.c.l.b16 %v1899
        %v2029 = vunpack.c.l.b16 %v1900
        %v2030 = vunpack.c.l.b16 %v1901
        %v2031 = vunpack.c.l.b16 %v1902
        %v2032 = vunpack.c.l.b16 %v1903
        %v2033 = vunpack.c.l.b16 %v1904
        %v2034 = vunpack.c.l.b16 %v1905
        %v2035 = vunpack.c.l.b16 %v1906
        %v2036 = vunpack.c.l.b16 %v1907
        %v2037 = vunpack.c.l.b16 %v1908
        %v2038 = vunpack.c.l.b16 %v1909
        %v2039 = vunpack.c.l.b16 %v1910
        %v2040 = vunpack.c.l.b16 %v1911
        %v2041 = vunpack.c.l.b16 %v1912
        %v2042 = vunpack.c.l.b16 %v1913
        %v2043 = vunpack.c.l.b16 %v1914
        %v2044 = vunpack.c.l.b16 %v1915
        %v2045 = vunpack.c.l.b16 %v1916
        %v2046 = vunpack.c.l.b16 %v1917
        %v2047 = vunpack.c.l.b16 %v1918
        %v2048 = vunpack.c.l.b16 %v1919
        %v2049 = vunpack.c.l.b16 %v1920
        %v2050 = vunpack.c.l.b16 %v1921
        %v2051 = vunpack.c.l.b16 %v1922
        %v2052 = vunpack.c.l.b16 %v1923
        %v2053 = vunpack.c.l.b16 %v1924
        %v2054 = vunpack.c.l.b16 %v1925
        %v2055 = vunpack.c.l.b16 %v1926
        %v2056 = vunpack.c.l.b16 %v1927
        %v2057 = vunpack.c.l.b16 %v1928
        %v2058 = vunpack.c.l.b16 %v1929
        %v2059 = vunpack.c.l.b16 %v1930
        %v2060 = vunpack.c.l.b16 %v1931
        %v2061 = vunpack.c.l.b16 %v1932
        %v2062 = vunpack.c.l.b16 %v1933
        %v2063 = vunpack.c.l.b16 %v1934
        %v2064 = vpack.c.b16 %v2001, %v2000
        %v2065 = vpack.c.b16 %v2003, %v2002
        %v2066 = vpack.c.b16 %v2005, %v2004
        %v2067 = vpack.c.b16 %v2007, %v2006
        %v2068 = vpack.c.b16 %v2009, %v2008
        %v2069 = vpack.c.b16 %v2011, %v2010
        %v2070 = vpack.c.b16 %v2013, %v2012
        %v2071 = vpack.c.b16 %v2015, %v2014
        %v2072 = vpack.c.b16 %v2017, %v2016
        %v2073 = vpack.c.b16 %v2019, %v2018
        %v2074 = vpack.c.b16 %v2021, %v2020
        %v2075 = vpack.c.b16 %v2023, %v2022
        %v2076 = vpack.c.b16 %v2025, %v2024
        %v2077 = vpack.c.b16 %v2027, %v2026
        %v2078 = vpack.c.b16 %v2029, %v2028
        %v2079 = vpack.c.b16 %v2031, %v2030
        %v2080 = vpack.c.b16 %v2033, %v2032
        %v2081 = vpack.c.b16 %v2035, %v2034
        %v2082 = vpack.c.b16 %v2037, %v2036
        %v2083 = vpack.c.b16 %v2039, %v2038
        %v2084 = vpack.c.b16 %v2041, %v2040
        %v2085 = vpack.c.b16 %v2043, %v2042
        %v2086 = vpack.c.b16 %v2045, %v2044
        %v2087 = vpack.c.b16 %v2047, %v2046
        %v2088 = vpack.c.b16 %v2049, %v2048
        %v2089 = vpack.c.b16 %v2051, %v2050
        %v2090 = vpack.c.b16 %v2053, %v2052
        %v2091 = vpack.c.b16 %v2055, %v2054
        %v2092 = vpack.c.b16 %v2057, %v2056
        %v2093 = vpack.c.b16 %v2059, %v2058
        %v2094 = vpack.c.b16 %v2061, %v2060
        %v2095 = vpack.c.b16 %v2063, %v2062
        %2128 = vmatprep.subr.bf16.mxu0 0
        %2129 = vmatpush1.bf16.msra.mxu0 %v2064
        %2130 = vmatprep.subr.bf16.mxu0 0
        %2131 = vmatpush1.bf16.msra.mxu0 %v2065
        %2132 = vmatprep.subr.bf16.mxu0 0
        %2133 = vmatpush1.bf16.msra.mxu0 %v2066
        %2134 = vmatprep.subr.bf16.mxu0 0
        %2135 = vmatpush1.bf16.msra.mxu0 %v2067
        %2136 = vmatprep.subr.bf16.mxu0 0
        %2137 = vmatpush1.bf16.msra.mxu0 %v2068
        %2138 = vmatprep.subr.bf16.mxu0 0
        %2139 = vmatpush1.bf16.msra.mxu0 %v2069
        %2140 = vmatprep.subr.bf16.mxu0 0
        %2141 = vmatpush1.bf16.msra.mxu0 %v2070
        %2142 = vmatprep.subr.bf16.mxu0 0
        %2143 = vmatpush1.bf16.msra.mxu0 %v2071
        %2144 = vmatprep.subr.bf16.mxu0 0
        %2145 = vmatpush1.bf16.msra.mxu0 %v2072
        %2146 = vmatprep.subr.bf16.mxu0 0
        %2147 = vmatpush1.bf16.msra.mxu0 %v2073
        %2148 = vmatprep.subr.bf16.mxu0 0
        %2149 = vmatpush1.bf16.msra.mxu0 %v2074
        %2150 = vmatprep.subr.bf16.mxu0 0
        %2151 = vmatpush1.bf16.msra.mxu0 %v2075
        %2152 = vmatprep.subr.bf16.mxu0 0
        %2153 = vmatpush1.bf16.msra.mxu0 %v2076
        %2154 = vmatprep.subr.bf16.mxu0 0
        %2155 = vmatpush1.bf16.msra.mxu0 %v2077
        %2156 = vmatprep.subr.bf16.mxu0 0
        %2157 = vmatpush1.bf16.msra.mxu0 %v2078
        %2158 = vmatprep.subr.bf16.mxu0 0
        %2159 = vmatpush1.bf16.msra.mxu0 %v2079
        %2160 = vmatprep.mubr.bf16.mxu0 %v1868
        %2161 = vmatmul.mubr.bf16.gmra.mrb[0].mxu0 %v1867
        %v2162 = vpop.f32.mrb[0].mxu0
        %v2163 = vadd.f32 %v1935, %v2162
        %v2164 = vpop.f32.mrb[0].mxu0
        %v2165 = vpop.f32.mrb[0].mxu0
        %v2166 = vpop.f32.mrb[0].mxu0
        %2167 = vdwg.mxu0
        %2168 = vmatprep.subr.bf16.mxu0 0
        %2169 = vmatpush1.bf16.msra.mxu0 %v2080
        %2170 = vmatprep.subr.bf16.mxu0 0
        %2171 = vmatpush1.bf16.msra.mxu0 %v2081
        %2172 = vmatprep.subr.bf16.mxu0 0
        %2173 = vmatpush1.bf16.msra.mxu0 %v2082
        %2174 = vmatprep.subr.bf16.mxu0 0
        %2175 = vmatpush1.bf16.msra.mxu0 %v2083
        %2176 = vmatprep.subr.bf16.mxu0 0
        %2177 = vmatpush1.bf16.msra.mxu0 %v2084
        %2178 = vmatprep.subr.bf16.mxu0 0
        %2179 = vmatpush1.bf16.msra.mxu0 %v2085
        %2180 = vmatprep.subr.bf16.mxu0 0
        %2181 = vmatpush1.bf16.msra.mxu0 %v2086
        %2182 = vmatprep.subr.bf16.mxu0 0
        %2183 = vmatpush1.bf16.msra.mxu0 %v2087
        %2184 = vmatprep.subr.bf16.mxu0 0
        %2185 = vmatpush1.bf16.msra.mxu0 %v2088
        %2186 = vmatprep.subr.bf16.mxu0 0
        %2187 = vmatpush1.bf16.msra.mxu0 %v2089
        %2188 = vmatprep.subr.bf16.mxu0 0
        %2189 = vmatpush1.bf16.msra.mxu0 %v2090
        %2190 = vmatprep.subr.bf16.mxu0 0
        %2191 = vmatpush1.bf16.msra.mxu0 %v2091
        %2192 = vmatprep.subr.bf16.mxu0 0
        %2193 = vmatpush1.bf16.msra.mxu0 %v2092
        %2194 = vmatprep.subr.bf16.mxu0 0
        %2195 = vmatpush1.bf16.msra.mxu0 %v2093
        %2196 = vmatprep.subr.bf16.mxu0 0
        %2197 = vmatpush1.bf16.msra.mxu0 %v2094
        %2198 = vmatprep.subr.bf16.mxu0 0
        %2199 = vmatpush1.bf16.msra.mxu0 %v2095
        %2200 = vmatprep.mubr.bf16.mxu0 %v1870
        %2201 = vmatmul.mubr.bf16.gmra.mrb[0].mxu0 %v1869
        %v2202 = vpop.f32.mrb[0].mxu0
        %v2203 = vadd.f32 %v2163, %v2202
        %v2204 = vpop.f32.mrb[0].mxu0
        %v2205 = vpop.f32.mrb[0].mxu0
        %v2206 = vpop.f32.mrb[0].mxu0
        %2207 = vdwg.mxu0
        %2208 = vst [vmem:[%s447] sm:$0x1] %v2203
        %s2209 = sand.u32 %s293, 1
        %s2210 = scalar_lea.sflag [#allocation4], %s2209
        %s2211 = sand.u32 %s293, 1
        %s2212 = scalar_lea.vmem [#allocation8], %s2211
        // Predicated region
        $region81: #{enhanced_cnn_forward.1} parent=67 // pred_check
          %p2213 = pneg %p303
        $region82: #{enhanced_cnn_forward.1} parent=67 // pred_check_branch
          %2215 = sbr.rel (%p2213) target = $region84
        $region83: #{enhanced_cnn_forward.1} parent=67 // pred_region
          %s2217 = ssub.s32 16, 16
          %2218 = vsyncadd %s2210, %s2217
          %s2219 = smul.addr %s28, 16
          %s2220 = scalar_lea.hbm %s12, %s2219
          %s2222 = sshll.u32 %s2212, 4
          %s2223 = int_to_ptr.vmem [resolvable:$true] %s2222
          %2225 = dma.vmem_to_hbm [thread:$0]  %s2223, 16, %s2220, %s2210
        $region84: #{enhanced_cnn_forward.1} parent=67 // pred_fallthru
          _
      $region68: #{enhanced_cnn_forward.1} parent=5 // pred_fallthru
        _
      %p2226 = scmp.le.s32.totalorder 2, %s23
      // Predicated region
      $region85: #{enhanced_cnn_forward.1} parent=5 // pred_check
        %p2227 = pneg %p2226
      $region86: #{enhanced_cnn_forward.1} parent=5 // pred_check_branch
        %2229 = sbr.rel (%p2227) target = $region88
      $region87: #{enhanced_cnn_forward.1} parent=5 // pred_region
        %s2230 = ssub.s32 %s23, 2
        // Predicated region
        $region89: #{enhanced_cnn_forward.1} parent=87 // pred_check
          %p2231 = pneg %p309
        $region90: #{enhanced_cnn_forward.1} parent=87 // pred_check_branch
          %2233 = sbr.rel (%p2231) target = $region92
        $region91: #{enhanced_cnn_forward.1} parent=87 // pred_region
          %s2234 = sand.u32 %s294, 1
          %s2235 = scalar_lea.sflag [#allocation4], %s2234
          %s2236 = sand.u32 %s294, 1
          %s2237 = scalar_lea.vmem [#allocation8], %s2236
          %2238 = dma.done %s2235, 16
        $region92: #{enhanced_cnn_forward.1} parent=87 // pred_fallthru
          _
      $region88: #{enhanced_cnn_forward.1} parent=5 // pred_fallthru
        _
    $region6: #{enhanced_cnn_forward.1} parent=1 // loop_footer
      %s27 = sadd.s32 1, %s23
    $region7: #{enhanced_cnn_forward.1} parent=1 // loop_footer_branch
      %22 = sbr.rel target = $region3
    $region8: #{enhanced_cnn_forward.1} parent=1 // loop_exit
      _
    %2239 = vsyncpa [#allocation3], 1
    %s2240 = scalar_lea.sflag [#allocation3], 1
    %2241 = vsyncpa %s2240, 1
    %2242 = vsyncpa [#allocation6], 1
    %2243 = vsyncpa [#allocation4], 1
    %s2244 = scalar_lea.sflag [#allocation4], 1
    %2245 = vsyncpa %s2244, 1

</llo_original>
